<compile_context>
chip_gen: v5e
topology: v5e:2x2
jax: 0.10.0
libtpu: 0.0.40
codegen_flags: <defaults>
</compile_context>

<pallas_src>
import functools

import jax
import jax.numpy as jnp
import numpy as np
from jax import lax
from jax.experimental import pallas as pl
from jax.experimental.pallas import tpu as pltpu


def _round_up(x, m):
    return ((x + m - 1) // m) * m


def _largest_divisor(n, cap):
    for d in range(min(n, cap), 0, -1):
        if n % d == 0:
            return d
    return 1


# ----------------------------------------------------------------------------
# Phase 1: batched input projection + x-side gate matmul (non-recurrent part).
# ----------------------------------------------------------------------------
def _gates_in_kernel(feat_ref, w_in_ref, b_in_ref, w_ih_ref, b_g_ref, out_ref):
    # x = feature @ W_in^T + b_in                         (rows, H_pad)
    x = jnp.dot(feat_ref[...], w_in_ref[...],
                preferred_element_type=jnp.float32) + b_in_ref[...]
    # gates_in = x @ W_ih^T + (b_ih + b_hh)               (rows, 4*H_pad)
    out_ref[...] = (jnp.dot(x, w_ih_ref[...],
                            preferred_element_type=jnp.float32)
                    + b_g_ref[...]).astype(out_ref.dtype)


# ----------------------------------------------------------------------------
# Phase 2: sequential LSTM recurrence (chunked) + hoisted fc_out per chunk.
# ----------------------------------------------------------------------------
def _lstm_recurrence_kernel(B_pad, H_pad, T_chunk,
                            gates_ref, h0_ref, c0_ref, w_hh_ref,
                            w_out_ref, b_out_ref,
                            out_ref, h_next_ref, c_next_ref,
                            h_s, c_s, h_chunk):
    chunk = pl.program_id(0)

    # Load initial state once; it persists in VMEM scratch across chunks.
    @pl.when(chunk == 0)
    def _():
        h_s[...] = h0_ref[...]
        c_s[...] = c0_ref[...]

    w_hh = w_hh_ref[...]

    def step(t, carry):
        h, c = carry
        r = pl.multiple_of(t * B_pad, B_pad)
        g_in = gates_ref[pl.ds(r, B_pad), :]                   # (B_pad, 4*H_pad)
        gates = g_in + jnp.dot(h, w_hh, preferred_element_type=jnp.float32)
        i = jax.nn.sigmoid(gates[:, 0 * H_pad:1 * H_pad])
        f = jax.nn.sigmoid(gates[:, 1 * H_pad:2 * H_pad])
        g = jnp.tanh(gates[:, 2 * H_pad:3 * H_pad])
        o = jax.nn.sigmoid(gates[:, 3 * H_pad:4 * H_pad])
        c = f * c + i * g
        h = o * jnp.tanh(c)
        h_chunk[pl.ds(r, B_pad), :] = h
        return h, c

    h, c = lax.fori_loop(0, T_chunk, step, (h_s[...], c_s[...]), unroll=True)
    h_s[...] = h
    c_s[...] = c

    # Hoisted fc_out: one lane/sublane-dense matmul per chunk.
    out_ref[...] = (jnp.dot(h_chunk[...], w_out_ref[...],
                            preferred_element_type=jnp.float32)
                    + b_out_ref[...]).astype(out_ref.dtype)

    # Final state: only the last chunk needs to store it.
    @pl.when(chunk == pl.num_programs(0) - 1)
    def _():
        h_next_ref[...] = h_s[...].astype(h_next_ref.dtype)
        c_next_ref[...] = c_s[...].astype(c_next_ref.dtype)


# ----------------------------------------------------------------------------
# Wrapper
# ----------------------------------------------------------------------------
def _pad_gates_axis(w, H, H_pad):
    """Pad the concatenated-gate axis (..., 4*H) -> (..., 4*H_pad), per gate."""
    if H_pad == H:
        return w
    lead = w.shape[:-1]
    w4 = w.reshape(lead + (4, H))
    w4 = jnp.pad(w4, [(0, 0)] * len(lead) + [(0, 0), (0, H_pad - H)])
    return w4.reshape(lead + (4 * H_pad,))


@jax.jit
def lstm_forward(feature, h0, c0,
                 w_in_t, b_in, w_ih_t, w_hh_t, b_g, w_out_t, b_out):
    """feature: (S, B, D); h0/c0: (1, B, H). Weights pre-transposed:
       w_in_t (D, H), w_ih_t (H, 4H), w_hh_t (H, 4H), w_out_t (H, V)."""
    S, B, D = feature.shape
    H = h0.shape[-1]
    V = w_out_t.shape[-1]

    B_pad = _round_up(B, 8)        # sublane alignment
    H_pad = _round_up(H, 128)      # lane alignment
    V_pad = _round_up(V, 128)

    # ---- zero-pad batch / hidden / vocab dims (exact for the LSTM math) ----
    feat_p = jnp.pad(feature, ((0, 0), (0, B_pad - B), (0, 0)))
    h0_p = jnp.pad(h0[0], ((0, B_pad - B), (0, H_pad - H)))
    c0_p = jnp.pad(c0[0], ((0, B_pad - B), (0, H_pad - H)))

    w_in_p = jnp.pad(w_in_t, ((0, 0), (0, H_pad - H)))                 # (D, Hp)
    b_in_p = jnp.pad(b_in, ((0, 0), (0, H_pad - H)))                   # (1, Hp)
    w_ih_p = _pad_gates_axis(jnp.pad(w_ih_t, ((0, H_pad - H), (0, 0))), H, H_pad)
    w_hh_p = _pad_gates_axis(jnp.pad(w_hh_t, ((0, H_pad - H), (0, 0))), H, H_pad)
    b_g_p = _pad_gates_axis(b_g, H, H_pad)                             # (1, 4Hp)
    w_out_p = jnp.pad(w_out_t, ((0, H_pad - H), (0, V_pad - V)))       # (Hp, Vp)
    b_out_p = jnp.pad(b_out, ((0, 0), (0, V_pad - V)))                 # (1, Vp)

    R = S * B_pad
    feat_2d = feat_p.reshape(R, D)

    # ---- phase 1: all non-recurrent matmuls, batched over the sequence -----
    s_tile = _largest_divisor(S, max(1, 512 // B_pad))
    tm = s_tile * B_pad
    gates_in = pl.pallas_call(
        _gates_in_kernel,
        grid_spec=pltpu.PrefetchScalarGridSpec(
            num_scalar_prefetch=0,
            grid=(R // tm,),
            in_specs=[
                pl.BlockSpec((tm, D), lambda r: (r, 0)),               # feature rows
                pl.BlockSpec((D, H_pad), lambda r: (0, 0)),            # W_in^T
                pl.BlockSpec((1, H_pad), lambda r: (0, 0)),            # b_in
                pl.BlockSpec((H_pad, 4 * H_pad), lambda r: (0, 0)),    # W_ih^T
                pl.BlockSpec((1, 4 * H_pad), lambda r: (0, 0)),        # b_ih + b_hh
            ],
            out_specs=pl.BlockSpec((tm, 4 * H_pad), lambda r: (r, 0)),
        ),
        out_shape=jax.ShapeDtypeStruct((R, 4 * H_pad), jnp.float32),
        compiler_params=pltpu.CompilerParams(
            dimension_semantics=("parallel",)),
    )(feat_2d, w_in_p, b_in_p, w_ih_p, b_g_p)

    # ---- phase 2: chunked sequential recurrence + hoisted fc_out ------------
    t_chunk = _largest_divisor(S, 8)
    rows_chunk = t_chunk * B_pad
    kernel = functools.partial(_lstm_recurrence_kernel, B_pad, H_pad, t_chunk)
    out_2d, h_next_p, c_next_p = pl.pallas_call(
        kernel,
        grid_spec=pltpu.PrefetchScalarGridSpec(
            num_scalar_prefetch=0,
            grid=(S // t_chunk,),
            in_specs=[
                pl.BlockSpec((rows_chunk, 4 * H_pad), lambda c: (c, 0)),  # gates_in chunk
                pl.BlockSpec((B_pad, H_pad), lambda c: (0, 0)),           # h0
                pl.BlockSpec((B_pad, H_pad), lambda c: (0, 0)),           # c0
                pl.BlockSpec((H_pad, 4 * H_pad), lambda c: (0, 0)),       # W_hh^T
                pl.BlockSpec((H_pad, V_pad), lambda c: (0, 0)),           # W_out^T
                pl.BlockSpec((1, V_pad), lambda c: (0, 0)),               # b_out
            ],
            out_specs=[
                pl.BlockSpec((rows_chunk, V_pad), lambda c: (c, 0)),      # output chunk
                pl.BlockSpec((B_pad, H_pad), lambda c: (0, 0)),           # h_next
                pl.BlockSpec((B_pad, H_pad), lambda c: (0, 0)),           # c_next
            ],
            scratch_shapes=[
                pltpu.VMEM((B_pad, H_pad), jnp.float32),                  # h state
                pltpu.VMEM((B_pad, H_pad), jnp.float32),                  # c state
                pltpu.VMEM((rows_chunk, H_pad), jnp.float32),             # h for the chunk
            ],
        ),
        out_shape=(
            jax.ShapeDtypeStruct((R, V_pad), jnp.float32),
            jax.ShapeDtypeStruct((B_pad, H_pad), jnp.float32),
            jax.ShapeDtypeStruct((B_pad, H_pad), jnp.float32),
        ),
        compiler_params=pltpu.CompilerParams(
            dimension_semantics=("arbitrary",)),   # sequential recurrence
    )(gates_in, h0_p, c0_p, w_hh_p, w_out_p, b_out_p)

    output = out_2d.reshape(S, B_pad, V_pad)[:, :B, :V]
    h_next = h_next_p[:B, :H][None]
    c_next = c_next_p[:B, :H][None]
    return output, h_next, c_next


# ----------------------------------------------------------------------------
# Parameters / module-level wrapper / reference
# ----------------------------------------------------------------------------
def _uniform(key, shape, fan_in):
    bound = 1.0 / np.sqrt(fan_in)
    return jax.random.uniform(key, shape, jnp.float32, -bound, bound)


def make_params(key, input_dim, hidden_size, vocab_size):
    """Deterministic synthetic parameters matching the torch module shapes."""
    ks = jax.random.split(key, 12)
    H, D, V = hidden_size, input_dim, vocab_size
    return {
        # fc_in_cnn: Linear(input_dim, H)
        "w_in_cnn": _uniform(ks[0], (H, D), D),
        "b_in_cnn": _uniform(ks[1], (1, H), D),
        # fc_in_other: Linear(26, H)
        "w_in_other": _uniform(ks[2], (H, 26), 26),
        "b_in_other": _uniform(ks[3], (1, H), 26),
        # nn.LSTM(H, H, num_layers=1)
        "w_ih": _uniform(ks[4], (4 * H, H), H),
        "w_hh": _uniform(ks[5], (4 * H, H), H),
        "b_ih": _uniform(ks[6], (1, 4 * H), H),
        "b_hh": _uniform(ks[7], (1, 4 * H), H),
        # fc_out: Linear(H, V)
        "w_out": _uniform(ks[8], (V, H), H),
        "b_out": _uniform(ks[9], (1, V), H),
    }


def lstm_module_forward(feature, h, c, params):
    """Mirrors LSTM.forward: picks fc_in_cnn vs fc_in_other by feature.shape[2]."""
    D = feature.shape[2]
    if D != 26:
        w_in, b_in = params["w_in_cnn"], params["b_in_cnn"]
    else:
        w_in, b_in = params["w_in_other"], params["b_in_other"]
    return lstm_forward(
        feature, h, c,
        jnp.transpose(w_in), b_in,
        jnp.transpose(params["w_ih"]), jnp.transpose(params["w_hh"]),
        params["b_ih"] + params["b_hh"],
        jnp.transpose(params["w_out"]), params["b_out"],
    )


def _reference(feature, h0, c0, params):
    """Pure-JAX reference for correctness checking."""
    D = feature.shape[2]
    if D != 26:
        w_in, b_in = params["w_in_cnn"], params["b_in_cnn"]
    else:
        w_in, b_in = params["w_in_other"], params["b_in_other"]
    H = h0.shape[-1]
    x = feature @ w_in.T + b_in
    w_ih_t = params["w_ih"].T
    w_hh_t = params["w_hh"].T
    b_g = params["b_ih"] + params["b_hh"]

    def step(carry, xt):
        h, c = carry
        gates = xt @ w_ih_t + h @ w_hh_t + b_g
        i = jax.nn.sigmoid(gates[:, 0 * H:1 * H])
        f = jax.nn.sigmoid(gates[:, 1 * H:2 * H])
        g = jnp.tanh(gates[:, 2 * H:3 * H])
        o = jax.nn.sigmoid(gates[:, 3 * H:4 * H])
        c2 = f * c + i * g
        h2 = o * jnp.tanh(c2)
        return (h2, c2), h2

    (hn, cn), hs = jax.lax.scan(step, (h0[0], c0[0]), x)
    out = hs @ params["w_out"].T + params["b_out"]
    return out, hn[None], cn[None]


if __name__ == "__main__":
    # Small, deterministic problem: seq=8, batch=2, input_dim=64 (!= 26 so the
    # fc_in_cnn path is taken), hidden=32, vocab=128, num_layers=1.
    S, B, INPUT_DIM, HIDDEN, VOCAB = 8, 2, 64, 32, 128

    key = jax.random.PRNGKey(0)
    k_feat, k_h, k_c, k_params = jax.random.split(key, 4)

    feature = jax.random.normal(k_feat, (S, B, INPUT_DIM), jnp.float32)
    h0 = jax.random.normal(k_h, (1, B, HIDDEN), jnp.float32)
    c0 = jax.random.normal(k_c, (1, B, HIDDEN), jnp.float32)
    params = make_params(k_params, INPUT_DIM, HIDDEN, VOCAB)

    out, h_next, c_next = lstm_module_forward(feature, h0, c0, params)
    jax.block_until_ready((out, h_next, c_next))

    out_r, h_r, c_r = _reference(feature, h0, c0, params)
    np.testing.assert_allclose(np.asarray(out), np.asarray(out_r),
                               rtol=1e-4, atol=1e-4)
    np.testing.assert_allclose(np.asarray(h_next), np.asarray(h_r),
                               rtol=1e-4, atol=1e-4)
    np.testing.assert_allclose(np.asarray(c_next), np.asarray(c_r),
                               rtol=1e-4, atol=1e-4)

    print("KERNEL_OK")
</pallas_src>

<mosaic_0001>
module attributes {stable_mosaic.version = 11 : i64} {
  func.func @_gates_in_kernel(%arg0: i32, %arg1: memref<64x64xf32, #tpu.memory_space<vmem>>, %arg2: memref<64x128xf32, #tpu.memory_space<vmem>>, %arg3: memref<1x128xf32, #tpu.memory_space<vmem>>, %arg4: memref<128x512xf32, #tpu.memory_space<vmem>>, %arg5: memref<1x512xf32, #tpu.memory_space<vmem>>, %arg6: memref<64x512xf32, #tpu.memory_space<vmem>>) attributes {dimension_semantics = [#tpu.dimension_semantics<parallel>], iteration_bounds = array<i64: 1>, scalar_prefetch = 0 : i64, scratch_operands = 0 : i64, tpu.core_type = #tpu.core_type<tc>, window_params = [{transform_indices = @transform_0, window_bounds = array<i64: 64, 64>}, {pipeline_mode = #tpu.pipeline_mode<synchronous>, transform_indices = @transform_1, window_bounds = array<i64: 64, 128>}, {pipeline_mode = #tpu.pipeline_mode<synchronous>, transform_indices = @transform_2, window_bounds = array<i64: 1, 128>}, {pipeline_mode = #tpu.pipeline_mode<synchronous>, transform_indices = @transform_3, window_bounds = array<i64: 128, 512>}, {pipeline_mode = #tpu.pipeline_mode<synchronous>, transform_indices = @transform_4, window_bounds = array<i64: 1, 512>}, {transform_indices = @transform_5, window_bounds = array<i64: 64, 512>}]} {
    %c0 = arith.constant 0 : index
    %c0_0 = arith.constant 0 : index
    %0 = vector.load %arg1[%c0, %c0_0] : memref<64x64xf32, #tpu.memory_space<vmem>>, vector<64x64xf32>
    %c0_1 = arith.constant 0 : index
    %c0_2 = arith.constant 0 : index
    %1 = vector.load %arg2[%c0_1, %c0_2] : memref<64x128xf32, #tpu.memory_space<vmem>>, vector<64x128xf32>
    %cst = arith.constant dense<0.000000e+00> : vector<64x128xf32>
    %2 = tpu.matmul %0, %1, %cst {dimension_numbers = #tpu.dot_dimension_numbers<[1], [0], [0], [1], [0, 0, 1, 1], [], []>} : vector<64x64xf32>, vector<64x128xf32>, vector<64x128xf32> -> vector<64x128xf32>
    %c0_3 = arith.constant 0 : index
    %c0_4 = arith.constant 0 : index
    %3 = vector.load %arg3[%c0_3, %c0_4] : memref<1x128xf32, #tpu.memory_space<vmem>>, vector<1x128xf32>
    %4 = vector.broadcast %3 : vector<1x128xf32> to vector<64x128xf32>
    %5 = arith.addf %2, %4 : vector<64x128xf32>
    %c0_5 = arith.constant 0 : index
    %c0_6 = arith.constant 0 : index
    %6 = vector.load %arg4[%c0_5, %c0_6] : memref<128x512xf32, #tpu.memory_space<vmem>>, vector<128x512xf32>
    %cst_7 = arith.constant dense<0.000000e+00> : vector<64x512xf32>
    %7 = tpu.matmul %5, %6, %cst_7 {dimension_numbers = #tpu.dot_dimension_numbers<[1], [0], [0], [1], [0, 0, 1, 1], [], []>} : vector<64x128xf32>, vector<128x512xf32>, vector<64x512xf32> -> vector<64x512xf32>
    %c0_8 = arith.constant 0 : index
    %c0_9 = arith.constant 0 : index
    %8 = vector.load %arg5[%c0_8, %c0_9] : memref<1x512xf32, #tpu.memory_space<vmem>>, vector<1x512xf32>
    %9 = vector.broadcast %8 : vector<1x512xf32> to vector<64x512xf32>
    %10 = arith.addf %7, %9 : vector<64x512xf32>
    %c0_10 = arith.constant 0 : index
    %c0_11 = arith.constant 0 : index
    %11 = vector.load %arg6[%c0_10, %c0_11] : memref<64x512xf32, #tpu.memory_space<vmem>>, vector<64x512xf32>
    tpu.vector_store %arg6[%c0_10, %c0_11], %10 {strides = array<i32>} : memref<64x512xf32, #tpu.memory_space<vmem>>, vector<64x512xf32>,
    return
  }
  func.func @transform_0(%arg0: i32) -> (i32, i32) {
    %c0_i32 = arith.constant 0 : i32
    %c0_i32_0 = arith.constant 0 : i32
    return %arg0, %c0_i32 : i32, i32
  }
  func.func @transform_1(%arg0: i32) -> (i32, i32) {
    %c0_i32 = arith.constant 0 : i32
    %c0_i32_0 = arith.constant 0 : i32
    %c0_i32_1 = arith.constant 0 : i32
    return %c0_i32, %c0_i32_0 : i32, i32
  }
  func.func @transform_2(%arg0: i32) -> (i32, i32) {
    %c0_i32 = arith.constant 0 : i32
    %c0_i32_0 = arith.constant 0 : i32
    %c0_i32_1 = arith.constant 0 : i32
    return %c0_i32, %c0_i32_0 : i32, i32
  }
  func.func @transform_3(%arg0: i32) -> (i32, i32) {
    %c0_i32 = arith.constant 0 : i32
    %c0_i32_0 = arith.constant 0 : i32
    %c0_i32_1 = arith.constant 0 : i32
    return %c0_i32, %c0_i32_0 : i32, i32
  }
  func.func @transform_4(%arg0: i32) -> (i32, i32) {
    %c0_i32 = arith.constant 0 : i32
    %c0_i32_0 = arith.constant 0 : i32
    %c0_i32_1 = arith.constant 0 : i32
    return %c0_i32, %c0_i32_0 : i32, i32
  }
  func.func @transform_5(%arg0: i32) -> (i32, i32) {
    %c0_i32 = arith.constant 0 : i32
    %c0_i32_0 = arith.constant 0 : i32
    return %arg0, %c0_i32 : i32, i32
  }
}

module attributes {stable_mosaic.version = 11 : i64} {
  func.func @_lstm_recurrence_kernel(%arg0: i32, %arg1: memref<64x512xf32, #tpu.memory_space<vmem>>, %arg2: memref<8x128xf32, #tpu.memory_space<vmem>>, %arg3: memref<8x128xf32, #tpu.memory_space<vmem>>, %arg4: memref<128x512xf32, #tpu.memory_space<vmem>>, %arg5: memref<128x128xf32, #tpu.memory_space<vmem>>, %arg6: memref<1x128xf32, #tpu.memory_space<vmem>>, %arg7: memref<64x128xf32, #tpu.memory_space<vmem>>, %arg8: memref<8x128xf32, #tpu.memory_space<vmem>>, %arg9: memref<8x128xf32, #tpu.memory_space<vmem>>, %arg10: memref<8x128xf32, #tpu.memory_space<vmem>>, %arg11: memref<8x128xf32, #tpu.memory_space<vmem>>, %arg12: memref<64x128xf32, #tpu.memory_space<vmem>>) attributes {dimension_semantics = [#tpu.dimension_semantics<arbitrary>], iteration_bounds = array<i64: 1>, scalar_prefetch = 0 : i64, scratch_operands = 3 : i64, tpu.core_type = #tpu.core_type<tc>, window_params = [{transform_indices = @transform_0, window_bounds = array<i64: 64, 512>}, {pipeline_mode = #tpu.pipeline_mode<synchronous>, transform_indices = @transform_1, window_bounds = array<i64: 8, 128>}, {pipeline_mode = #tpu.pipeline_mode<synchronous>, transform_indices = @transform_2, window_bounds = array<i64: 8, 128>}, {pipeline_mode = #tpu.pipeline_mode<synchronous>, transform_indices = @transform_3, window_bounds = array<i64: 128, 512>}, {pipeline_mode = #tpu.pipeline_mode<synchronous>, transform_indices = @transform_4, window_bounds = array<i64: 128, 128>}, {pipeline_mode = #tpu.pipeline_mode<synchronous>, transform_indices = @transform_5, window_bounds = array<i64: 1, 128>}, {transform_indices = @transform_6, window_bounds = array<i64: 64, 128>}, {pipeline_mode = #tpu.pipeline_mode<synchronous>, transform_indices = @transform_7, window_bounds = array<i64: 8, 128>}, {pipeline_mode = #tpu.pipeline_mode<synchronous>, transform_indices = @transform_8, window_bounds = array<i64: 8, 128>}]} {
    %c0_i32 = arith.constant 0 : i32
    %0 = arith.cmpi eq, %arg0, %c0_i32 : i32
    %1 = arith.extui %0 : i1 to i32
    %c0_i32_0 = arith.constant 0 : i32
    %2 = arith.cmpi ne, %1, %c0_i32_0 : i32
    scf.if %2 {
      %c0_77 = arith.constant 0 : index
      %c0_78 = arith.constant 0 : index
      %282 = vector.load %arg2[%c0_77, %c0_78] : memref<8x128xf32, #tpu.memory_space<vmem>>, vector<8x128xf32>
      %c0_79 = arith.constant 0 : index
      %c0_80 = arith.constant 0 : index
      %283 = vector.load %arg10[%c0_79, %c0_80] : memref<8x128xf32, #tpu.memory_space<vmem>>, vector<8x128xf32>
      tpu.vector_store %arg10[%c0_79, %c0_80], %282 {strides = array<i32>} : memref<8x128xf32, #tpu.memory_space<vmem>>, vector<8x128xf32>,
      %c0_81 = arith.constant 0 : index
      %c0_82 = arith.constant 0 : index
      %284 = vector.load %arg3[%c0_81, %c0_82] : memref<8x128xf32, #tpu.memory_space<vmem>>, vector<8x128xf32>
      %c0_83 = arith.constant 0 : index
      %c0_84 = arith.constant 0 : index
      %285 = vector.load %arg11[%c0_83, %c0_84] : memref<8x128xf32, #tpu.memory_space<vmem>>, vector<8x128xf32>
      tpu.vector_store %arg11[%c0_83, %c0_84], %284 {strides = array<i32>} : memref<8x128xf32, #tpu.memory_space<vmem>>, vector<8x128xf32>,
    } else {
    }
    %c0 = arith.constant 0 : index
    %c0_1 = arith.constant 0 : index
    %3 = vector.load %arg4[%c0, %c0_1] : memref<128x512xf32, #tpu.memory_space<vmem>>, vector<128x512xf32>
    %c0_2 = arith.constant 0 : index
    %c0_3 = arith.constant 0 : index
    %4 = vector.load %arg10[%c0_2, %c0_3] : memref<8x128xf32, #tpu.memory_space<vmem>>, vector<8x128xf32>
    %c0_4 = arith.constant 0 : index
    %c0_5 = arith.constant 0 : index
    %5 = vector.load %arg11[%c0_4, %c0_5] : memref<8x128xf32, #tpu.memory_space<vmem>>, vector<8x128xf32>
    %c0_i32_6 = arith.constant 0 : i32
    %c8_i32 = arith.constant 8 : i32
    %6 = arith.muli %c0_i32_6, %c8_i32 : i32
    %7 = tpu.assume_multiple %6, 8 : i32
    %8 = arith.index_cast %7 : i32 to index
    %c0_7 = arith.constant 0 : index
    %9 = vector.load %arg1[%8, %c0_7] : memref<64x512xf32, #tpu.memory_space<vmem>>, vector<8x512xf32>
    %cst = arith.constant dense<0.000000e+00> : vector<8x512xf32>
    %10 = tpu.matmul %4, %3, %cst {dimension_numbers = #tpu.dot_dimension_numbers<[1], [0], [0], [1], [0, 0, 1, 1], [], []>} : vector<8x128xf32>, vector<128x512xf32>, vector<8x512xf32> -> vector<8x512xf32>
    %11 = arith.addf %9, %10 : vector<8x512xf32>
    %12 = vector.extract_strided_slice %11 {offsets = [0, 0], sizes = [8, 128], strides = [1, 1]} : vector<8x512xf32> to vector<8x128xf32>
    %13 = arith.negf %12 : vector<8x128xf32>
    %14 = math.exp %13 : vector<8x128xf32>
    %cst_8 = arith.constant 1.000000e+00 : f32
    %15 = vector.broadcast %cst_8 : f32 to vector<8x128xf32>
    %16 = arith.addf %15, %14 : vector<8x128xf32>
    %17 = arith.divf %15, %16 : vector<8x128xf32>
    %18 = vector.extract_strided_slice %11 {offsets = [0, 128], sizes = [8, 128], strides = [1, 1]} : vector<8x512xf32> to vector<8x128xf32>
    %19 = arith.negf %18 : vector<8x128xf32>
    %20 = math.exp %19 : vector<8x128xf32>
    %cst_9 = arith.constant 1.000000e+00 : f32
    %21 = vector.broadcast %cst_9 : f32 to vector<8x128xf32>
    %22 = arith.addf %21, %20 : vector<8x128xf32>
    %23 = arith.divf %21, %22 : vector<8x128xf32>
    %24 = vector.extract_strided_slice %11 {offsets = [0, 256], sizes = [8, 128], strides = [1, 1]} : vector<8x512xf32> to vector<8x128xf32>
    %25 = math.tanh %24 : vector<8x128xf32>
    %26 = vector.extract_strided_slice %11 {offsets = [0, 384], sizes = [8, 128], strides = [1, 1]} : vector<8x512xf32> to vector<8x128xf32>
    %27 = arith.negf %26 : vector<8x128xf32>
    %28 = math.exp %27 : vector<8x128xf32>
    %cst_10 = arith.constant 1.000000e+00 : f32
    %29 = vector.broadcast %cst_10 : f32 to vector<8x128xf32>
    %30 = arith.addf %29, %28 : vector<8x128xf32>
    %31 = arith.divf %29, %30 : vector<8x128xf32>
    %32 = arith.mulf %23, %5 : vector<8x128xf32>
    %33 = arith.mulf %17, %25 : vector<8x128xf32>
    %34 = arith.addf %32, %33 : vector<8x128xf32>
    %35 = math.tanh %34 : vector<8x128xf32>
    %36 = arith.mulf %31, %35 : vector<8x128xf32>
    %37 = arith.index_cast %7 : i32 to index
    %c0_11 = arith.constant 0 : index
    %38 = vector.load %arg12[%37, %c0_11] : memref<64x128xf32, #tpu.memory_space<vmem>>, vector<8x128xf32>
    tpu.vector_store %arg12[%37, %c0_11], %36 {strides = array<i32>} : memref<64x128xf32, #tpu.memory_space<vmem>>, vector<8x128xf32>,
    %c1_i32 = arith.constant 1 : i32
    %c8_i32_12 = arith.constant 8 : i32
    %39 = arith.muli %c1_i32, %c8_i32_12 : i32
    %40 = tpu.assume_multiple %39, 8 : i32
    %41 = arith.index_cast %40 : i32 to index
    %c0_13 = arith.constant 0 : index
    %42 = vector.load %arg1[%41, %c0_13] : memref<64x512xf32, #tpu.memory_space<vmem>>, vector<8x512xf32>
    %cst_14 = arith.constant dense<0.000000e+00> : vector<8x512xf32>
    %43 = tpu.matmul %36, %3, %cst_14 {dimension_numbers = #tpu.dot_dimension_numbers<[1], [0], [0], [1], [0, 0, 1, 1], [], []>} : vector<8x128xf32>, vector<128x512xf32>, vector<8x512xf32> -> vector<8x512xf32>
    %44 = arith.addf %42, %43 : vector<8x512xf32>
    %45 = vector.extract_strided_slice %44 {offsets = [0, 0], sizes = [8, 128], strides = [1, 1]} : vector<8x512xf32> to vector<8x128xf32>
    %46 = arith.negf %45 : vector<8x128xf32>
    %47 = math.exp %46 : vector<8x128xf32>
    %cst_15 = arith.constant 1.000000e+00 : f32
    %48 = vector.broadcast %cst_15 : f32 to vector<8x128xf32>
    %49 = arith.addf %48, %47 : vector<8x128xf32>
    %50 = arith.divf %48, %49 : vector<8x128xf32>
    %51 = vector.extract_strided_slice %44 {offsets = [0, 128], sizes = [8, 128], strides = [1, 1]} : vector<8x512xf32> to vector<8x128xf32>
    %52 = arith.negf %51 : vector<8x128xf32>
    %53 = math.exp %52 : vector<8x128xf32>
    %cst_16 = arith.constant 1.000000e+00 : f32
    %54 = vector.broadcast %cst_16 : f32 to vector<8x128xf32>
    %55 = arith.addf %54, %53 : vector<8x128xf32>
    %56 = arith.divf %54, %55 : vector<8x128xf32>
    %57 = vector.extract_strided_slice %44 {offsets = [0, 256], sizes = [8, 128], strides = [1, 1]} : vector<8x512xf32> to vector<8x128xf32>
    %58 = math.tanh %57 : vector<8x128xf32>
    %59 = vector.extract_strided_slice %44 {offsets = [0, 384], sizes = [8, 128], strides = [1, 1]} : vector<8x512xf32> to vector<8x128xf32>
    %60 = arith.negf %59 : vector<8x128xf32>
    %61 = math.exp %60 : vector<8x128xf32>
    %cst_17 = arith.constant 1.000000e+00 : f32
    %62 = vector.broadcast %cst_17 : f32 to vector<8x128xf32>
    %63 = arith.addf %62, %61 : vector<8x128xf32>
    %64 = arith.divf %62, %63 : vector<8x128xf32>
    %65 = arith.mulf %56, %34 : vector<8x128xf32>
    %66 = arith.mulf %50, %58 : vector<8x128xf32>
    %67 = arith.addf %65, %66 : vector<8x128xf32>
    %68 = math.tanh %67 : vector<8x128xf32>
    %69 = arith.mulf %64, %68 : vector<8x128xf32>
    %70 = arith.index_cast %40 : i32 to index
    %c0_18 = arith.constant 0 : index
    %71 = vector.load %arg12[%70, %c0_18] : memref<64x128xf32, #tpu.memory_space<vmem>>, vector<8x128xf32>
    tpu.vector_store %arg12[%70, %c0_18], %69 {strides = array<i32>} : memref<64x128xf32, #tpu.memory_space<vmem>>, vector<8x128xf32>,
    %c2_i32 = arith.constant 2 : i32
    %c8_i32_19 = arith.constant 8 : i32
    %72 = arith.muli %c2_i32, %c8_i32_19 : i32
    %73 = tpu.assume_multiple %72, 8 : i32
    %74 = arith.index_cast %73 : i32 to index
    %c0_20 = arith.constant 0 : index
    %75 = vector.load %arg1[%74, %c0_20] : memref<64x512xf32, #tpu.memory_space<vmem>>, vector<8x512xf32>
    %cst_21 = arith.constant dense<0.000000e+00> : vector<8x512xf32>
    %76 = tpu.matmul %69, %3, %cst_21 {dimension_numbers = #tpu.dot_dimension_numbers<[1], [0], [0], [1], [0, 0, 1, 1], [], []>} : vector<8x128xf32>, vector<128x512xf32>, vector<8x512xf32> -> vector<8x512xf32>
    %77 = arith.addf %75, %76 : vector<8x512xf32>
    %78 = vector.extract_strided_slice %77 {offsets = [0, 0], sizes = [8, 128], strides = [1, 1]} : vector<8x512xf32> to vector<8x128xf32>
    %79 = arith.negf %78 : vector<8x128xf32>
    %80 = math.exp %79 : vector<8x128xf32>
    %cst_22 = arith.constant 1.000000e+00 : f32
    %81 = vector.broadcast %cst_22 : f32 to vector<8x128xf32>
    %82 = arith.addf %81, %80 : vector<8x128xf32>
    %83 = arith.divf %81, %82 : vector<8x128xf32>
    %84 = vector.extract_strided_slice %77 {offsets = [0, 128], sizes = [8, 128], strides = [1, 1]} : vector<8x512xf32> to vector<8x128xf32>
    %85 = arith.negf %84 : vector<8x128xf32>
    %86 = math.exp %85 : vector<8x128xf32>
    %cst_23 = arith.constant 1.000000e+00 : f32
    %87 = vector.broadcast %cst_23 : f32 to vector<8x128xf32>
    %88 = arith.addf %87, %86 : vector<8x128xf32>
    %89 = arith.divf %87, %88 : vector<8x128xf32>
    %90 = vector.extract_strided_slice %77 {offsets = [0, 256], sizes = [8, 128], strides = [1, 1]} : vector<8x512xf32> to vector<8x128xf32>
    %91 = math.tanh %90 : vector<8x128xf32>
    %92 = vector.extract_strided_slice %77 {offsets = [0, 384], sizes = [8, 128], strides = [1, 1]} : vector<8x512xf32> to vector<8x128xf32>
    %93 = arith.negf %92 : vector<8x128xf32>
    %94 = math.exp %93 : vector<8x128xf32>
    %cst_24 = arith.constant 1.000000e+00 : f32
    %95 = vector.broadcast %cst_24 : f32 to vector<8x128xf32>
    %96 = arith.addf %95, %94 : vector<8x128xf32>
    %97 = arith.divf %95, %96 : vector<8x128xf32>
    %98 = arith.mulf %89, %67 : vector<8x128xf32>
    %99 = arith.mulf %83, %91 : vector<8x128xf32>
    %100 = arith.addf %98, %99 : vector<8x128xf32>
    %101 = math.tanh %100 : vector<8x128xf32>
    %102 = arith.mulf %97, %101 : vector<8x128xf32>
    %103 = arith.index_cast %73 : i32 to index
    %c0_25 = arith.constant 0 : index
    %104 = vector.load %arg12[%103, %c0_25] : memref<64x128xf32, #tpu.memory_space<vmem>>, vector<8x128xf32>
    tpu.vector_store %arg12[%103, %c0_25], %102 {strides = array<i32>} : memref<64x128xf32, #tpu.memory_space<vmem>>, vector<8x128xf32>,
    %c3_i32 = arith.constant 3 : i32
    %c8_i32_26 = arith.constant 8 : i32
    %105 = arith.muli %c3_i32, %c8_i32_26 : i32
    %106 = tpu.assume_multiple %105, 8 : i32
    %107 = arith.index_cast %106 : i32 to index
    %c0_27 = arith.constant 0 : index
    %108 = vector.load %arg1[%107, %c0_27] : memref<64x512xf32, #tpu.memory_space<vmem>>, vector<8x512xf32>
    %cst_28 = arith.constant dense<0.000000e+00> : vector<8x512xf32>
    %109 = tpu.matmul %102, %3, %cst_28 {dimension_numbers = #tpu.dot_dimension_numbers<[1], [0], [0], [1], [0, 0, 1, 1], [], []>} : vector<8x128xf32>, vector<128x512xf32>, vector<8x512xf32> -> vector<8x512xf32>
    %110 = arith.addf %108, %109 : vector<8x512xf32>
    %111 = vector.extract_strided_slice %110 {offsets = [0, 0], sizes = [8, 128], strides = [1, 1]} : vector<8x512xf32> to vector<8x128xf32>
    %112 = arith.negf %111 : vector<8x128xf32>
    %113 = math.exp %112 : vector<8x128xf32>
    %cst_29 = arith.constant 1.000000e+00 : f32
    %114 = vector.broadcast %cst_29 : f32 to vector<8x128xf32>
    %115 = arith.addf %114, %113 : vector<8x128xf32>
    %116 = arith.divf %114, %115 : vector<8x128xf32>
    %117 = vector.extract_strided_slice %110 {offsets = [0, 128], sizes = [8, 128], strides = [1, 1]} : vector<8x512xf32> to vector<8x128xf32>
    %118 = arith.negf %117 : vector<8x128xf32>
    %119 = math.exp %118 : vector<8x128xf32>
    %cst_30 = arith.constant 1.000000e+00 : f32
    %120 = vector.broadcast %cst_30 : f32 to vector<8x128xf32>
    %121 = arith.addf %120, %119 : vector<8x128xf32>
    %122 = arith.divf %120, %121 : vector<8x128xf32>
    %123 = vector.extract_strided_slice %110 {offsets = [0, 256], sizes = [8, 128], strides = [1, 1]} : vector<8x512xf32> to vector<8x128xf32>
    %124 = math.tanh %123 : vector<8x128xf32>
    %125 = vector.extract_strided_slice %110 {offsets = [0, 384], sizes = [8, 128], strides = [1, 1]} : vector<8x512xf32> to vector<8x128xf32>
    %126 = arith.negf %125 : vector<8x128xf32>
    %127 = math.exp %126 : vector<8x128xf32>
    %cst_31 = arith.constant 1.000000e+00 : f32
    %128 = vector.broadcast %cst_31 : f32 to vector<8x128xf32>
    %129 = arith.addf %128, %127 : vector<8x128xf32>
    %130 = arith.divf %128, %129 : vector<8x128xf32>
    %131 = arith.mulf %122, %100 : vector<8x128xf32>
    %132 = arith.mulf %116, %124 : vector<8x128xf32>
    %133 = arith.addf %131, %132 : vector<8x128xf32>
    %134 = math.tanh %133 : vector<8x128xf32>
    %135 = arith.mulf %130, %134 : vector<8x128xf32>
    %136 = arith.index_cast %106 : i32 to index
    %c0_32 = arith.constant 0 : index
    %137 = vector.load %arg12[%136, %c0_32] : memref<64x128xf32, #tpu.memory_space<vmem>>, vector<8x128xf32>
    tpu.vector_store %arg12[%136, %c0_32], %135 {strides = array<i32>} : memref<64x128xf32, #tpu.memory_space<vmem>>, vector<8x128xf32>,
    %c4_i32 = arith.constant 4 : i32
    %c8_i32_33 = arith.constant 8 : i32
    %138 = arith.muli %c4_i32, %c8_i32_33 : i32
    %139 = tpu.assume_multiple %138, 8 : i32
    %140 = arith.index_cast %139 : i32 to index
    %c0_34 = arith.constant 0 : index
    %141 = vector.load %arg1[%140, %c0_34] : memref<64x512xf32, #tpu.memory_space<vmem>>, vector<8x512xf32>
    %cst_35 = arith.constant dense<0.000000e+00> : vector<8x512xf32>
    %142 = tpu.matmul %135, %3, %cst_35 {dimension_numbers = #tpu.dot_dimension_numbers<[1], [0], [0], [1], [0, 0, 1, 1], [], []>} : vector<8x128xf32>, vector<128x512xf32>, vector<8x512xf32> -> vector<8x512xf32>
    %143 = arith.addf %141, %142 : vector<8x512xf32>
    %144 = vector.extract_strided_slice %143 {offsets = [0, 0], sizes = [8, 128], strides = [1, 1]} : vector<8x512xf32> to vector<8x128xf32>
    %145 = arith.negf %144 : vector<8x128xf32>
    %146 = math.exp %145 : vector<8x128xf32>
    %cst_36 = arith.constant 1.000000e+00 : f32
    %147 = vector.broadcast %cst_36 : f32 to vector<8x128xf32>
    %148 = arith.addf %147, %146 : vector<8x128xf32>
    %149 = arith.divf %147, %148 : vector<8x128xf32>
    %150 = vector.extract_strided_slice %143 {offsets = [0, 128], sizes = [8, 128], strides = [1, 1]} : vector<8x512xf32> to vector<8x128xf32>
    %151 = arith.negf %150 : vector<8x128xf32>
    %152 = math.exp %151 : vector<8x128xf32>
    %cst_37 = arith.constant 1.000000e+00 : f32
    %153 = vector.broadcast %cst_37 : f32 to vector<8x128xf32>
    %154 = arith.addf %153, %152 : vector<8x128xf32>
    %155 = arith.divf %153, %154 : vector<8x128xf32>
    %156 = vector.extract_strided_slice %143 {offsets = [0, 256], sizes = [8, 128], strides = [1, 1]} : vector<8x512xf32> to vector<8x128xf32>
    %157 = math.tanh %156 : vector<8x128xf32>
    %158 = vector.extract_strided_slice %143 {offsets = [0, 384], sizes = [8, 128], strides = [1, 1]} : vector<8x512xf32> to vector<8x128xf32>
    %159 = arith.negf %158 : vector<8x128xf32>
    %160 = math.exp %159 : vector<8x128xf32>
    %cst_38 = arith.constant 1.000000e+00 : f32
    %161 = vector.broadcast %cst_38 : f32 to vector<8x128xf32>
    %162 = arith.addf %161, %160 : vector<8x128xf32>
    %163 = arith.divf %161, %162 : vector<8x128xf32>
    %164 = arith.mulf %155, %133 : vector<8x128xf32>
    %165 = arith.mulf %149, %157 : vector<8x128xf32>
    %166 = arith.addf %164, %165 : vector<8x128xf32>
    %167 = math.tanh %166 : vector<8x128xf32>
    %168 = arith.mulf %163, %167 : vector<8x128xf32>
    %169 = arith.index_cast %139 : i32 to index
    %c0_39 = arith.constant 0 : index
    %170 = vector.load %arg12[%169, %c0_39] : memref<64x128xf32, #tpu.memory_space<vmem>>, vector<8x128xf32>
    tpu.vector_store %arg12[%169, %c0_39], %168 {strides = array<i32>} : memref<64x128xf32, #tpu.memory_space<vmem>>, vector<8x128xf32>,
    %c5_i32 = arith.constant 5 : i32
    %c8_i32_40 = arith.constant 8 : i32
    %171 = arith.muli %c5_i32, %c8_i32_40 : i32
    %172 = tpu.assume_multiple %171, 8 : i32
    %173 = arith.index_cast %172 : i32 to index
    %c0_41 = arith.constant 0 : index
    %174 = vector.load %arg1[%173, %c0_41] : memref<64x512xf32, #tpu.memory_space<vmem>>, vector<8x512xf32>
    %cst_42 = arith.constant dense<0.000000e+00> : vector<8x512xf32>
    %175 = tpu.matmul %168, %3, %cst_42 {dimension_numbers = #tpu.dot_dimension_numbers<[1], [0], [0], [1], [0, 0, 1, 1], [], []>} : vector<8x128xf32>, vector<128x512xf32>, vector<8x512xf32> -> vector<8x512xf32>
    %176 = arith.addf %174, %175 : vector<8x512xf32>
    %177 = vector.extract_strided_slice %176 {offsets = [0, 0], sizes = [8, 128], strides = [1, 1]} : vector<8x512xf32> to vector<8x128xf32>
    %178 = arith.negf %177 : vector<8x128xf32>
    %179 = math.exp %178 : vector<8x128xf32>
    %cst_43 = arith.constant 1.000000e+00 : f32
    %180 = vector.broadcast %cst_43 : f32 to vector<8x128xf32>
    %181 = arith.addf %180, %179 : vector<8x128xf32>
    %182 = arith.divf %180, %181 : vector<8x128xf32>
    %183 = vector.extract_strided_slice %176 {offsets = [0, 128], sizes = [8, 128], strides = [1, 1]} : vector<8x512xf32> to vector<8x128xf32>
    %184 = arith.negf %183 : vector<8x128xf32>
    %185 = math.exp %184 : vector<8x128xf32>
    %cst_44 = arith.constant 1.000000e+00 : f32
    %186 = vector.broadcast %cst_44 : f32 to vector<8x128xf32>
    %187 = arith.addf %186, %185 : vector<8x128xf32>
    %188 = arith.divf %186, %187 : vector<8x128xf32>
    %189 = vector.extract_strided_slice %176 {offsets = [0, 256], sizes = [8, 128], strides = [1, 1]} : vector<8x512xf32> to vector<8x128xf32>
    %190 = math.tanh %189 : vector<8x128xf32>
    %191 = vector.extract_strided_slice %176 {offsets = [0, 384], sizes = [8, 128], strides = [1, 1]} : vector<8x512xf32> to vector<8x128xf32>
    %192 = arith.negf %191 : vector<8x128xf32>
    %193 = math.exp %192 : vector<8x128xf32>
    %cst_45 = arith.constant 1.000000e+00 : f32
    %194 = vector.broadcast %cst_45 : f32 to vector<8x128xf32>
    %195 = arith.addf %194, %193 : vector<8x128xf32>
    %196 = arith.divf %194, %195 : vector<8x128xf32>
    %197 = arith.mulf %188, %166 : vector<8x128xf32>
    %198 = arith.mulf %182, %190 : vector<8x128xf32>
    %199 = arith.addf %197, %198 : vector<8x128xf32>
    %200 = math.tanh %199 : vector<8x128xf32>
    %201 = arith.mulf %196, %200 : vector<8x128xf32>
    %202 = arith.index_cast %172 : i32 to index
    %c0_46 = arith.constant 0 : index
    %203 = vector.load %arg12[%202, %c0_46] : memref<64x128xf32, #tpu.memory_space<vmem>>, vector<8x128xf32>
    tpu.vector_store %arg12[%202, %c0_46], %201 {strides = array<i32>} : memref<64x128xf32, #tpu.memory_space<vmem>>, vector<8x128xf32>,
    %c6_i32 = arith.constant 6 : i32
    %c8_i32_47 = arith.constant 8 : i32
    %204 = arith.muli %c6_i32, %c8_i32_47 : i32
    %205 = tpu.assume_multiple %204, 8 : i32
    %206 = arith.index_cast %205 : i32 to index
    %c0_48 = arith.constant 0 : index
    %207 = vector.load %arg1[%206, %c0_48] : memref<64x512xf32, #tpu.memory_space<vmem>>, vector<8x512xf32>
    %cst_49 = arith.constant dense<0.000000e+00> : vector<8x512xf32>
    %208 = tpu.matmul %201, %3, %cst_49 {dimension_numbers = #tpu.dot_dimension_numbers<[1], [0], [0], [1], [0, 0, 1, 1], [], []>} : vector<8x128xf32>, vector<128x512xf32>, vector<8x512xf32> -> vector<8x512xf32>
    %209 = arith.addf %207, %208 : vector<8x512xf32>
    %210 = vector.extract_strided_slice %209 {offsets = [0, 0], sizes = [8, 128], strides = [1, 1]} : vector<8x512xf32> to vector<8x128xf32>
    %211 = arith.negf %210 : vector<8x128xf32>
    %212 = math.exp %211 : vector<8x128xf32>
    %cst_50 = arith.constant 1.000000e+00 : f32
    %213 = vector.broadcast %cst_50 : f32 to vector<8x128xf32>
    %214 = arith.addf %213, %212 : vector<8x128xf32>
    %215 = arith.divf %213, %214 : vector<8x128xf32>
    %216 = vector.extract_strided_slice %209 {offsets = [0, 128], sizes = [8, 128], strides = [1, 1]} : vector<8x512xf32> to vector<8x128xf32>
    %217 = arith.negf %216 : vector<8x128xf32>
    %218 = math.exp %217 : vector<8x128xf32>
    %cst_51 = arith.constant 1.000000e+00 : f32
    %219 = vector.broadcast %cst_51 : f32 to vector<8x128xf32>
    %220 = arith.addf %219, %218 : vector<8x128xf32>
    %221 = arith.divf %219, %220 : vector<8x128xf32>
    %222 = vector.extract_strided_slice %209 {offsets = [0, 256], sizes = [8, 128], strides = [1, 1]} : vector<8x512xf32> to vector<8x128xf32>
    %223 = math.tanh %222 : vector<8x128xf32>
    %224 = vector.extract_strided_slice %209 {offsets = [0, 384], sizes = [8, 128], strides = [1, 1]} : vector<8x512xf32> to vector<8x128xf32>
    %225 = arith.negf %224 : vector<8x128xf32>
    %226 = math.exp %225 : vector<8x128xf32>
    %cst_52 = arith.constant 1.000000e+00 : f32
    %227 = vector.broadcast %cst_52 : f32 to vector<8x128xf32>
    %228 = arith.addf %227, %226 : vector<8x128xf32>
    %229 = arith.divf %227, %228 : vector<8x128xf32>
    %230 = arith.mulf %221, %199 : vector<8x128xf32>
    %231 = arith.mulf %215, %223 : vector<8x128xf32>
    %232 = arith.addf %230, %231 : vector<8x128xf32>
    %233 = math.tanh %232 : vector<8x128xf32>
    %234 = arith.mulf %229, %233 : vector<8x128xf32>
    %235 = arith.index_cast %205 : i32 to index
    %c0_53 = arith.constant 0 : index
    %236 = vector.load %arg12[%235, %c0_53] : memref<64x128xf32, #tpu.memory_space<vmem>>, vector<8x128xf32>
    tpu.vector_store %arg12[%235, %c0_53], %234 {strides = array<i32>} : memref<64x128xf32, #tpu.memory_space<vmem>>, vector<8x128xf32>,
    %c7_i32 = arith.constant 7 : i32
    %c8_i32_54 = arith.constant 8 : i32
    %237 = arith.muli %c7_i32, %c8_i32_54 : i32
    %238 = tpu.assume_multiple %237, 8 : i32
    %239 = arith.index_cast %238 : i32 to index
    %c0_55 = arith.constant 0 : index
    %240 = vector.load %arg1[%239, %c0_55] : memref<64x512xf32, #tpu.memory_space<vmem>>, vector<8x512xf32>
    %cst_56 = arith.constant dense<0.000000e+00> : vector<8x512xf32>
    %241 = tpu.matmul %234, %3, %cst_56 {dimension_numbers = #tpu.dot_dimension_numbers<[1], [0], [0], [1], [0, 0, 1, 1], [], []>} : vector<8x128xf32>, vector<128x512xf32>, vector<8x512xf32> -> vector<8x512xf32>
    %242 = arith.addf %240, %241 : vector<8x512xf32>
    %243 = vector.extract_strided_slice %242 {offsets = [0, 0], sizes = [8, 128], strides = [1, 1]} : vector<8x512xf32> to vector<8x128xf32>
    %244 = arith.negf %243 : vector<8x128xf32>
    %245 = math.exp %244 : vector<8x128xf32>
    %cst_57 = arith.constant 1.000000e+00 : f32
    %246 = vector.broadcast %cst_57 : f32 to vector<8x128xf32>
    %247 = arith.addf %246, %245 : vector<8x128xf32>
    %248 = arith.divf %246, %247 : vector<8x128xf32>
    %249 = vector.extract_strided_slice %242 {offsets = [0, 128], sizes = [8, 128], strides = [1, 1]} : vector<8x512xf32> to vector<8x128xf32>
    %250 = arith.negf %249 : vector<8x128xf32>
    %251 = math.exp %250 : vector<8x128xf32>
    %cst_58 = arith.constant 1.000000e+00 : f32
    %252 = vector.broadcast %cst_58 : f32 to vector<8x128xf32>
    %253 = arith.addf %252, %251 : vector<8x128xf32>
    %254 = arith.divf %252, %253 : vector<8x128xf32>
    %255 = vector.extract_strided_slice %242 {offsets = [0, 256], sizes = [8, 128], strides = [1, 1]} : vector<8x512xf32> to vector<8x128xf32>
    %256 = math.tanh %255 : vector<8x128xf32>
    %257 = vector.extract_strided_slice %242 {offsets = [0, 384], sizes = [8, 128], strides = [1, 1]} : vector<8x512xf32> to vector<8x128xf32>
    %258 = arith.negf %257 : vector<8x128xf32>
    %259 = math.exp %258 : vector<8x128xf32>
    %cst_59 = arith.constant 1.000000e+00 : f32
    %260 = vector.broadcast %cst_59 : f32 to vector<8x128xf32>
    %261 = arith.addf %260, %259 : vector<8x128xf32>
    %262 = arith.divf %260, %261 : vector<8x128xf32>
    %263 = arith.mulf %254, %232 : vector<8x128xf32>
    %264 = arith.mulf %248, %256 : vector<8x128xf32>
    %265 = arith.addf %263, %264 : vector<8x128xf32>
    %266 = math.tanh %265 : vector<8x128xf32>
    %267 = arith.mulf %262, %266 : vector<8x128xf32>
    %268 = arith.index_cast %238 : i32 to index
    %c0_60 = arith.constant 0 : index
    %269 = vector.load %arg12[%268, %c0_60] : memref<64x128xf32, #tpu.memory_space<vmem>>, vector<8x128xf32>
    tpu.vector_store %arg12[%268, %c0_60], %267 {strides = array<i32>} : memref<64x128xf32, #tpu.memory_space<vmem>>, vector<8x128xf32>,
    %c8_i32_61 = arith.constant 8 : i32
    %c0_62 = arith.constant 0 : index
    %c0_63 = arith.constant 0 : index
    %270 = vector.load %arg10[%c0_62, %c0_63] : memref<8x128xf32, #tpu.memory_space<vmem>>, vector<8x128xf32>
    tpu.vector_store %arg10[%c0_62, %c0_63], %267 {strides = array<i32>} : memref<8x128xf32, #tpu.memory_space<vmem>>, vector<8x128xf32>,
    %c0_64 = arith.constant 0 : index
    %c0_65 = arith.constant 0 : index
    %271 = vector.load %arg11[%c0_64, %c0_65] : memref<8x128xf32, #tpu.memory_space<vmem>>, vector<8x128xf32>
    tpu.vector_store %arg11[%c0_64, %c0_65], %265 {strides = array<i32>} : memref<8x128xf32, #tpu.memory_space<vmem>>, vector<8x128xf32>,
    %c0_66 = arith.constant 0 : index
    %c0_67 = arith.constant 0 : index
    %272 = vector.load %arg12[%c0_66, %c0_67] : memref<64x128xf32, #tpu.memory_space<vmem>>, vector<64x128xf32>
    %c0_68 = arith.constant 0 : index
    %c0_69 = arith.constant 0 : index
    %273 = vector.load %arg5[%c0_68, %c0_69] : memref<128x128xf32, #tpu.memory_space<vmem>>, vector<128x128xf32>
    %cst_70 = arith.constant dense<0.000000e+00> : vector<64x128xf32>
    %274 = tpu.matmul %272, %273, %cst_70 {dimension_numbers = #tpu.dot_dimension_numbers<[1], [0], [0], [1], [0, 0, 1, 1], [], []>} : vector<64x128xf32>, vector<128x128xf32>, vector<64x128xf32> -> vector<64x128xf32>
    %c0_71 = arith.constant 0 : index
    %c0_72 = arith.constant 0 : index
    %275 = vector.load %arg6[%c0_71, %c0_72] : memref<1x128xf32, #tpu.memory_space<vmem>>, vector<1x128xf32>
    %276 = vector.broadcast %275 : vector<1x128xf32> to vector<64x128xf32>
    %277 = arith.addf %274, %276 : vector<64x128xf32>
    %c0_73 = arith.constant 0 : index
    %c0_74 = arith.constant 0 : index
    %278 = vector.load %arg7[%c0_73, %c0_74] : memref<64x128xf32, #tpu.memory_space<vmem>>, vector<64x128xf32>
    tpu.vector_store %arg7[%c0_73, %c0_74], %277 {strides = array<i32>} : memref<64x128xf32, #tpu.memory_space<vmem>>, vector<64x128xf32>,
    %c0_i32_75 = arith.constant 0 : i32
    %279 = arith.cmpi eq, %arg0, %c0_i32_75 : i32
    %280 = arith.extui %279 : i1 to i32
    %c0_i32_76 = arith.constant 0 : i32
    %281 = arith.cmpi ne, %280, %c0_i32_76 : i32
    scf.if %281 {
      %c0_77 = arith.constant 0 : index
      %c0_78 = arith.constant 0 : index
      %282 = vector.load %arg10[%c0_77, %c0_78] : memref<8x128xf32, #tpu.memory_space<vmem>>, vector<8x128xf32>
      %c0_79 = arith.constant 0 : index
      %c0_80 = arith.constant 0 : index
      %283 = vector.load %arg8[%c0_79, %c0_80] : memref<8x128xf32, #tpu.memory_space<vmem>>, vector<8x128xf32>
      tpu.vector_store %arg8[%c0_79, %c0_80], %282 {strides = array<i32>} : memref<8x128xf32, #tpu.memory_space<vmem>>, vector<8x128xf32>,
      %c0_81 = arith.constant 0 : index
      %c0_82 = arith.constant 0 : index
      %284 = vector.load %arg11[%c0_81, %c0_82] : memref<8x128xf32, #tpu.memory_space<vmem>>, vector<8x128xf32>
      %c0_83 = arith.constant 0 : index
      %c0_84 = arith.constant 0 : index
      %285 = vector.load %arg9[%c0_83, %c0_84] : memref<8x128xf32, #tpu.memory_space<vmem>>, vector<8x128xf32>
      tpu.vector_store %arg9[%c0_83, %c0_84], %284 {strides = array<i32>} : memref<8x128xf32, #tpu.memory_space<vmem>>, vector<8x128xf32>,
    } else {
    }
    return
  }
  func.func @transform_0(%arg0: i32) -> (i32, i32) {
    %c0_i32 = arith.constant 0 : i32
    %c0_i32_0 = arith.constant 0 : i32
    return %arg0, %c0_i32 : i32, i32
  }
  func.func @transform_1(%arg0: i32) -> (i32, i32) {
    %c0_i32 = arith.constant 0 : i32
    %c0_i32_0 = arith.constant 0 : i32
    %c0_i32_1 = arith.constant 0 : i32
    return %c0_i32, %c0_i32_0 : i32, i32
  }
  func.func @transform_2(%arg0: i32) -> (i32, i32) {
    %c0_i32 = arith.constant 0 : i32
    %c0_i32_0 = arith.constant 0 : i32
    %c0_i32_1 = arith.constant 0 : i32
    return %c0_i32, %c0_i32_0 : i32, i32
  }
  func.func @transform_3(%arg0: i32) -> (i32, i32) {
    %c0_i32 = arith.constant 0 : i32
    %c0_i32_0 = arith.constant 0 : i32
    %c0_i32_1 = arith.constant 0 : i32
    return %c0_i32, %c0_i32_0 : i32, i32
  }
  func.func @transform_4(%arg0: i32) -> (i32, i32) {
    %c0_i32 = arith.constant 0 : i32
    %c0_i32_0 = arith.constant 0 : i32
    %c0_i32_1 = arith.constant 0 : i32
    return %c0_i32, %c0_i32_0 : i32, i32
  }
  func.func @transform_5(%arg0: i32) -> (i32, i32) {
    %c0_i32 = arith.constant 0 : i32
    %c0_i32_0 = arith.constant 0 : i32
    %c0_i32_1 = arith.constant 0 : i32
    return %c0_i32, %c0_i32_0 : i32, i32
  }
  func.func @transform_6(%arg0: i32) -> (i32, i32) {
    %c0_i32 = arith.constant 0 : i32
    %c0_i32_0 = arith.constant 0 : i32
    return %arg0, %c0_i32 : i32, i32
  }
  func.func @transform_7(%arg0: i32) -> (i32, i32) {
    %c0_i32 = arith.constant 0 : i32
    %c0_i32_0 = arith.constant 0 : i32
    %c0_i32_1 = arith.constant 0 : i32
    return %c0_i32, %c0_i32_0 : i32, i32
  }
  func.func @transform_8(%arg0: i32) -> (i32, i32) {
    %c0_i32 = arith.constant 0 : i32
    %c0_i32_0 = arith.constant 0 : i32
    %c0_i32_1 = arith.constant 0 : i32
    return %c0_i32, %c0_i32_0 : i32, i32
  }
}

</mosaic_0001>

<llo_original>
// kernel: lstm_forward.2
$region0: #{lstm_forward.2}
  #allocation0 [shape = 'u32[]', space=smem, size = 0x4, offset = 0x4, fixed_abs, tag = 'smem constant byte address 0x4 - core index']
  #allocation1 [shape = 'u32[72,128]{1,0:T(1,128)}', space=vmem, size = 0x9000, scoped, tag = 'internal scratch']
  %s0 = inlined_call_operand.vmem [shape: f32[64,64], index: 0, kind: input, shape index: {}]
  %s1 = inlined_call_operand.vmem [shape: f32[64,128], index: 1, kind: input, shape index: {}]
  %s2 = inlined_call_operand.vmem [shape: f32[1,128], index: 2, kind: input, shape index: {}]
  %s3 = inlined_call_operand.vmem [shape: f32[128,512], index: 3, kind: input, shape index: {}]
  %s4 = inlined_call_operand.vmem [shape: f32[1,512], index: 4, kind: input, shape index: {}]
  %s5 = inlined_call_operand.vmem [shape: f32[64,512], index: 5, kind: output, shape index: {}]
  %s6 = sld [smem:[#allocation0]]
  $region30: #{lstm_forward.2} parent=0
    _
  %s8 = ssub.s32 1, %s6
  %s9 = scalar_select 0, %s8, %s6
  // Predicated region
  $region2: #{lstm_forward.2} parent=0 // pred_check
    _
  $region3: #{lstm_forward.2} parent=0 // pred_check_branch
    %11 = sbr.rel (0) target = $region5
  $region4: #{lstm_forward.2} parent=0 // pred_region
    _
  $region5: #{lstm_forward.2} parent=0 // pred_fallthru
    _
  // Predicated region
  $region6: #{lstm_forward.2} parent=0 // pred_check
    _
  $region7: #{lstm_forward.2} parent=0 // pred_check_branch
    %13 = sbr.rel (0) target = $region9
  $region8: #{lstm_forward.2} parent=0 // pred_region
    _
  $region9: #{lstm_forward.2} parent=0 // pred_fallthru
    _
  // Predicated region
  $region10: #{lstm_forward.2} parent=0 // pred_check
    _
  $region11: #{lstm_forward.2} parent=0 // pred_check_branch
    %15 = sbr.rel (0) target = $region13
  $region12: #{lstm_forward.2} parent=0 // pred_region
    _
  $region13: #{lstm_forward.2} parent=0 // pred_fallthru
    _
  // Predicated region
  $region14: #{lstm_forward.2} parent=0 // pred_check
    _
  $region15: #{lstm_forward.2} parent=0 // pred_check_branch
    %17 = sbr.rel (0) target = $region17
  $region16: #{lstm_forward.2} parent=0 // pred_region
    _
  $region17: #{lstm_forward.2} parent=0 // pred_fallthru
    _
  // Predicated region
  $region18: #{lstm_forward.2} parent=0 // pred_check
    _
  $region19: #{lstm_forward.2} parent=0 // pred_check_branch
    %19 = sbr.rel (0) target = $region21
  $region20: #{lstm_forward.2} parent=0 // pred_region
    _
  $region21: #{lstm_forward.2} parent=0 // pred_fallthru
    _
  %v20 = vld [vmem:[%s0] sm:$0xff]
  %v21 = vld [vmem:[%s0 + $0x8] sm:$0xff]
  %v22 = vld [vmem:[%s0 + $0x10] sm:$0xff]
  %v23 = vld [vmem:[%s0 + $0x18] sm:$0xff]
  %v24 = vld [vmem:[%s0 + $0x20] sm:$0xff]
  %v25 = vld [vmem:[%s0 + $0x28] sm:$0xff]
  %v26 = vld [vmem:[%s0 + $0x30] sm:$0xff]
  %v27 = vld [vmem:[%s0 + $0x38] sm:$0xff]
  %v28 = vld [vmem:[%s1] sm:$0xff]
  %v29 = vld [vmem:[%s1 + $0x8] sm:$0xff]
  %v30 = vld [vmem:[%s1 + $0x10] sm:$0xff]
  %v31 = vld [vmem:[%s1 + $0x18] sm:$0xff]
  %v32 = vld [vmem:[%s1 + $0x20] sm:$0xff]
  %v33 = vld [vmem:[%s1 + $0x28] sm:$0xff]
  %v34 = vld [vmem:[%s1 + $0x30] sm:$0xff]
  %v35 = vld [vmem:[%s1 + $0x38] sm:$0xff]
  %v36 = vld [vmem:[%s2] sm:$0x1]
  %v38 = vperm.slane %v36, 0
  %vm40 = vcmask 523264
  %v42 = vsel %vm40, %v20, 0
  %v45 = vsel %vm40, %v21, 0
  %v48 = vsel %vm40, %v22, 0
  %v51 = vsel %vm40, %v23, 0
  %v54 = vsel %vm40, %v24, 0
  %v57 = vsel %vm40, %v25, 0
  %v60 = vsel %vm40, %v26, 0
  %v63 = vsel %vm40, %v27, 0
  %65 = vmatpush.msra.mxu0 0.0
  %66 = vmatpush.msra.mxu0 0.0
  %67 = vmatpush.msra.mxu0 0.0
  %68 = vmatpush.msra.mxu0 0.0
  %69 = vmatpush.msra.mxu0 0.0
  %70 = vmatpush.msra.mxu0 0.0
  %71 = vmatpush.msra.mxu0 0.0
  %72 = vmatpush.msra.mxu0 0.0
  %73 = vmatpush.msra.mxu0 %v35
  %74 = vmatpush.msra.mxu0 %v34
  %75 = vmatpush.msra.mxu0 %v33
  %76 = vmatpush.msra.mxu0 %v32
  %77 = vmatpush.msra.mxu0 %v31
  %78 = vmatpush.msra.mxu0 %v30
  %79 = vmatpush.msra.mxu0 %v29
  %80 = vmatpush.msra.mxu0 %v28
  %81 = vmatmul.f32.gmra.mxu0 %v42
  %v82 = vpop.f32.mrf.mxu0
  %v83 = vadd.f32 %v38, %v82
  %84 = vmatmul.f32.gmra.mxu0 %v45
  %v85 = vpop.f32.mrf.mxu0
  %v86 = vadd.f32 %v38, %v85
  %87 = vmatmul.f32.gmra.mxu0 %v48
  %v88 = vpop.f32.mrf.mxu0
  %v89 = vadd.f32 %v38, %v88
  %90 = vmatmul.f32.gmra.mxu0 %v51
  %v91 = vpop.f32.mrf.mxu0
  %v92 = vadd.f32 %v38, %v91
  %93 = vmatmul.f32.gmra.mxu0 %v54
  %v94 = vpop.f32.mrf.mxu0
  %v95 = vadd.f32 %v38, %v94
  %96 = vmatmul.f32.gmra.mxu0 %v57
  %v97 = vpop.f32.mrf.mxu0
  %v98 = vadd.f32 %v38, %v97
  %99 = vmatmul.f32.gmra.mxu0 %v60
  %v100 = vpop.f32.mrf.mxu0
  %v101 = vadd.f32 %v38, %v100
  %102 = vmatmul.f32.gmra.mxu0 %v63
  %v103 = vpop.f32.mrf.mxu0
  %v104 = vadd.f32 %v38, %v103
  %105 = vdwg.mxu0
  %v106 = vld [vmem:[%s3] sm:$0xff]
  %v107 = vld [vmem:[%s3 + $0x8] sm:$0xff]
  %v108 = vld [vmem:[%s3 + $0x10] sm:$0xff]
  %v109 = vld [vmem:[%s3 + $0x18] sm:$0xff]
  %v110 = vld [vmem:[%s3 + $0x20] sm:$0xff]
  %v111 = vld [vmem:[%s3 + $0x28] sm:$0xff]
  %v112 = vld [vmem:[%s3 + $0x30] sm:$0xff]
  %v113 = vld [vmem:[%s3 + $0x38] sm:$0xff]
  %v114 = vld [vmem:[%s3 + $0x40] sm:$0xff]
  %v115 = vld [vmem:[%s3 + $0x48] sm:$0xff]
  %v116 = vld [vmem:[%s3 + $0x50] sm:$0xff]
  %v117 = vld [vmem:[%s3 + $0x58] sm:$0xff]
  %v118 = vld [vmem:[%s3 + $0x60] sm:$0xff]
  %v119 = vld [vmem:[%s3 + $0x68] sm:$0xff]
  %v120 = vld [vmem:[%s3 + $0x70] sm:$0xff]
  %v121 = vld [vmem:[%s3 + $0x78] sm:$0xff]
  %v122 = vld [vmem:[%s3 + $0x80] sm:$0xff]
  %v123 = vld [vmem:[%s3 + $0x88] sm:$0xff]
  %v124 = vld [vmem:[%s3 + $0x90] sm:$0xff]
  %v125 = vld [vmem:[%s3 + $0x98] sm:$0xff]
  %v126 = vld [vmem:[%s3 + $0xa0] sm:$0xff]
  %v127 = vld [vmem:[%s3 + $0xa8] sm:$0xff]
  %v128 = vld [vmem:[%s3 + $0xb0] sm:$0xff]
  %v129 = vld [vmem:[%s3 + $0xb8] sm:$0xff]
  %v130 = vld [vmem:[%s3 + $0xc0] sm:$0xff]
  %v131 = vld [vmem:[%s3 + $0xc8] sm:$0xff]
  %v132 = vld [vmem:[%s3 + $0xd0] sm:$0xff]
  %v133 = vld [vmem:[%s3 + $0xd8] sm:$0xff]
  %v134 = vld [vmem:[%s3 + $0xe0] sm:$0xff]
  %v135 = vld [vmem:[%s3 + $0xe8] sm:$0xff]
  %v136 = vld [vmem:[%s3 + $0xf0] sm:$0xff]
  %v137 = vld [vmem:[%s3 + $0xf8] sm:$0xff]
  %v138 = vld [vmem:[%s3 + $0x100] sm:$0xff]
  %v139 = vld [vmem:[%s3 + $0x108] sm:$0xff]
  %v140 = vld [vmem:[%s3 + $0x110] sm:$0xff]
  %v141 = vld [vmem:[%s3 + $0x118] sm:$0xff]
  %v142 = vld [vmem:[%s3 + $0x120] sm:$0xff]
  %v143 = vld [vmem:[%s3 + $0x128] sm:$0xff]
  %v144 = vld [vmem:[%s3 + $0x130] sm:$0xff]
  %v145 = vld [vmem:[%s3 + $0x138] sm:$0xff]
  %v146 = vld [vmem:[%s3 + $0x140] sm:$0xff]
  %v147 = vld [vmem:[%s3 + $0x148] sm:$0xff]
  %v148 = vld [vmem:[%s3 + $0x150] sm:$0xff]
  %v149 = vld [vmem:[%s3 + $0x158] sm:$0xff]
  %v150 = vld [vmem:[%s3 + $0x160] sm:$0xff]
  %v151 = vld [vmem:[%s3 + $0x168] sm:$0xff]
  %v152 = vld [vmem:[%s3 + $0x170] sm:$0xff]
  %v153 = vld [vmem:[%s3 + $0x178] sm:$0xff]
  %v154 = vld [vmem:[%s3 + $0x180] sm:$0xff]
  %v155 = vld [vmem:[%s3 + $0x188] sm:$0xff]
  %v156 = vld [vmem:[%s3 + $0x190] sm:$0xff]
  %v157 = vld [vmem:[%s3 + $0x198] sm:$0xff]
  %v158 = vld [vmem:[%s3 + $0x1a0] sm:$0xff]
  %v159 = vld [vmem:[%s3 + $0x1a8] sm:$0xff]
  %v160 = vld [vmem:[%s3 + $0x1b0] sm:$0xff]
  %v161 = vld [vmem:[%s3 + $0x1b8] sm:$0xff]
  %v162 = vld [vmem:[%s3 + $0x1c0] sm:$0xff]
  %v163 = vld [vmem:[%s3 + $0x1c8] sm:$0xff]
  %v164 = vld [vmem:[%s3 + $0x1d0] sm:$0xff]
  %v165 = vld [vmem:[%s3 + $0x1d8] sm:$0xff]
  %v166 = vld [vmem:[%s3 + $0x1e0] sm:$0xff]
  %v167 = vld [vmem:[%s3 + $0x1e8] sm:$0xff]
  %v168 = vld [vmem:[%s3 + $0x1f0] sm:$0xff]
  %v169 = vld [vmem:[%s3 + $0x1f8] sm:$0xff]
  %v170 = vld [vmem:[%s4] sm:$0xf]
  %v172 = vperm.slane %v170, 0
  %v173 = vperm.slane %v170, 1
  %v174 = vperm.slane %v170, 2
  %v175 = vperm.slane %v170, 3
  %180 = vmatpush.msra.mxu0 %v166
  %181 = vmatpush.msra.mxu0 %v162
  %182 = vmatpush.msra.mxu0 %v158
  %183 = vmatpush.msra.mxu0 %v154
  %184 = vmatpush.msra.mxu0 %v150
  %185 = vmatpush.msra.mxu0 %v146
  %186 = vmatpush.msra.mxu0 %v142
  %187 = vmatpush.msra.mxu0 %v138
  %188 = vmatpush.msra.mxu0 %v134
  %189 = vmatpush.msra.mxu0 %v130
  %190 = vmatpush.msra.mxu0 %v126
  %191 = vmatpush.msra.mxu0 %v122
  %192 = vmatpush.msra.mxu0 %v118
  %193 = vmatpush.msra.mxu0 %v114
  %194 = vmatpush.msra.mxu0 %v110
  %195 = vmatpush.msra.mxu0 %v106
  %196 = vmatmul.f32.gmra.mxu0 %v83
  %v197 = vpop.f32.mrf.mxu0
  %v198 = vadd.f32 %v172, %v197
  %199 = vmatmul.f32.gmra.mxu0 %v86
  %v200 = vpop.f32.mrf.mxu0
  %v201 = vadd.f32 %v172, %v200
  %202 = vmatmul.f32.gmra.mxu0 %v89
  %v203 = vpop.f32.mrf.mxu0
  %v204 = vadd.f32 %v172, %v203
  %205 = vmatmul.f32.gmra.mxu0 %v92
  %v206 = vpop.f32.mrf.mxu0
  %v207 = vadd.f32 %v172, %v206
  %208 = vmatmul.f32.gmra.mxu0 %v95
  %v209 = vpop.f32.mrf.mxu0
  %v210 = vadd.f32 %v172, %v209
  %211 = vmatmul.f32.gmra.mxu0 %v98
  %v212 = vpop.f32.mrf.mxu0
  %v213 = vadd.f32 %v172, %v212
  %214 = vmatmul.f32.gmra.mxu0 %v101
  %v215 = vpop.f32.mrf.mxu0
  %v216 = vadd.f32 %v172, %v215
  %217 = vmatmul.f32.gmra.mxu0 %v104
  %v218 = vpop.f32.mrf.mxu0
  %v219 = vadd.f32 %v172, %v218
  %220 = vdwg.mxu0
  %221 = vmatpush.msra.mxu0 %v167
  %222 = vmatpush.msra.mxu0 %v163
  %223 = vmatpush.msra.mxu0 %v159
  %224 = vmatpush.msra.mxu0 %v155
  %225 = vmatpush.msra.mxu0 %v151
  %226 = vmatpush.msra.mxu0 %v147
  %227 = vmatpush.msra.mxu0 %v143
  %228 = vmatpush.msra.mxu0 %v139
  %229 = vmatpush.msra.mxu0 %v135
  %230 = vmatpush.msra.mxu0 %v131
  %231 = vmatpush.msra.mxu0 %v127
  %232 = vmatpush.msra.mxu0 %v123
  %233 = vmatpush.msra.mxu0 %v119
  %234 = vmatpush.msra.mxu0 %v115
  %235 = vmatpush.msra.mxu0 %v111
  %236 = vmatpush.msra.mxu0 %v107
  %237 = vmatmul.f32.gmra.mxu0 %v83
  %v238 = vpop.f32.mrf.mxu0
  %v239 = vadd.f32 %v173, %v238
  %240 = vmatmul.f32.gmra.mxu0 %v86
  %v241 = vpop.f32.mrf.mxu0
  %v242 = vadd.f32 %v173, %v241
  %243 = vmatmul.f32.gmra.mxu0 %v89
  %v244 = vpop.f32.mrf.mxu0
  %v245 = vadd.f32 %v173, %v244
  %246 = vmatmul.f32.gmra.mxu0 %v92
  %v247 = vpop.f32.mrf.mxu0
  %v248 = vadd.f32 %v173, %v247
  %249 = vmatmul.f32.gmra.mxu0 %v95
  %v250 = vpop.f32.mrf.mxu0
  %v251 = vadd.f32 %v173, %v250
  %252 = vmatmul.f32.gmra.mxu0 %v98
  %v253 = vpop.f32.mrf.mxu0
  %v254 = vadd.f32 %v173, %v253
  %255 = vmatmul.f32.gmra.mxu0 %v101
  %v256 = vpop.f32.mrf.mxu0
  %v257 = vadd.f32 %v173, %v256
  %258 = vmatmul.f32.gmra.mxu0 %v104
  %v259 = vpop.f32.mrf.mxu0
  %v260 = vadd.f32 %v173, %v259
  %261 = vdwg.mxu0
  %262 = vmatpush.msra.mxu0 %v168
  %263 = vmatpush.msra.mxu0 %v164
  %264 = vmatpush.msra.mxu0 %v160
  %265 = vmatpush.msra.mxu0 %v156
  %266 = vmatpush.msra.mxu0 %v152
  %267 = vmatpush.msra.mxu0 %v148
  %268 = vmatpush.msra.mxu0 %v144
  %269 = vmatpush.msra.mxu0 %v140
  %270 = vmatpush.msra.mxu0 %v136
  %271 = vmatpush.msra.mxu0 %v132
  %272 = vmatpush.msra.mxu0 %v128
  %273 = vmatpush.msra.mxu0 %v124
  %274 = vmatpush.msra.mxu0 %v120
  %275 = vmatpush.msra.mxu0 %v116
  %276 = vmatpush.msra.mxu0 %v112
  %277 = vmatpush.msra.mxu0 %v108
  %278 = vmatmul.f32.gmra.mxu0 %v83
  %v279 = vpop.f32.mrf.mxu0
  %v280 = vadd.f32 %v174, %v279
  %281 = vmatmul.f32.gmra.mxu0 %v86
  %v282 = vpop.f32.mrf.mxu0
  %v283 = vadd.f32 %v174, %v282
  %284 = vmatmul.f32.gmra.mxu0 %v89
  %v285 = vpop.f32.mrf.mxu0
  %v286 = vadd.f32 %v174, %v285
  %287 = vmatmul.f32.gmra.mxu0 %v92
  %v288 = vpop.f32.mrf.mxu0
  %v289 = vadd.f32 %v174, %v288
  %290 = vmatmul.f32.gmra.mxu0 %v95
  %v291 = vpop.f32.mrf.mxu0
  %v292 = vadd.f32 %v174, %v291
  %293 = vmatmul.f32.gmra.mxu0 %v98
  %v294 = vpop.f32.mrf.mxu0
  %v295 = vadd.f32 %v174, %v294
  %296 = vmatmul.f32.gmra.mxu0 %v101
  %v297 = vpop.f32.mrf.mxu0
  %v298 = vadd.f32 %v174, %v297
  %299 = vmatmul.f32.gmra.mxu0 %v104
  %v300 = vpop.f32.mrf.mxu0
  %v301 = vadd.f32 %v174, %v300
  %302 = vdwg.mxu0
  %303 = vmatpush.msra.mxu0 %v169
  %304 = vmatpush.msra.mxu0 %v165
  %305 = vmatpush.msra.mxu0 %v161
  %306 = vmatpush.msra.mxu0 %v157
  %307 = vmatpush.msra.mxu0 %v153
  %308 = vmatpush.msra.mxu0 %v149
  %309 = vmatpush.msra.mxu0 %v145
  %310 = vmatpush.msra.mxu0 %v141
  %311 = vmatpush.msra.mxu0 %v137
  %312 = vmatpush.msra.mxu0 %v133
  %313 = vmatpush.msra.mxu0 %v129
  %314 = vmatpush.msra.mxu0 %v125
  %315 = vmatpush.msra.mxu0 %v121
  %316 = vmatpush.msra.mxu0 %v117
  %317 = vmatpush.msra.mxu0 %v113
  %318 = vmatpush.msra.mxu0 %v109
  %319 = vmatmul.f32.gmra.mxu0 %v83
  %v320 = vpop.f32.mrf.mxu0
  %v321 = vadd.f32 %v175, %v320
  %322 = vmatmul.f32.gmra.mxu0 %v86
  %v323 = vpop.f32.mrf.mxu0
  %v324 = vadd.f32 %v175, %v323
  %325 = vmatmul.f32.gmra.mxu0 %v89
  %v326 = vpop.f32.mrf.mxu0
  %v327 = vadd.f32 %v175, %v326
  %328 = vmatmul.f32.gmra.mxu0 %v92
  %v329 = vpop.f32.mrf.mxu0
  %v330 = vadd.f32 %v175, %v329
  %331 = vmatmul.f32.gmra.mxu0 %v95
  %v332 = vpop.f32.mrf.mxu0
  %v333 = vadd.f32 %v175, %v332
  %334 = vmatmul.f32.gmra.mxu0 %v98
  %v335 = vpop.f32.mrf.mxu0
  %v336 = vadd.f32 %v175, %v335
  %337 = vmatmul.f32.gmra.mxu0 %v101
  %v338 = vpop.f32.mrf.mxu0
  %v339 = vadd.f32 %v175, %v338
  %340 = vmatmul.f32.gmra.mxu0 %v104
  %v341 = vpop.f32.mrf.mxu0
  %v342 = vadd.f32 %v175, %v341
  %343 = vdwg.mxu0
  %344 = vst [vmem:[%s5] sm:$0xff] %v198
  %345 = vst [vmem:[%s5 + $0x8] sm:$0xff] %v239
  %346 = vst [vmem:[%s5 + $0x10] sm:$0xff] %v280
  %347 = vst [vmem:[%s5 + $0x18] sm:$0xff] %v321
  %348 = vst [vmem:[%s5 + $0x20] sm:$0xff] %v201
  %349 = vst [vmem:[%s5 + $0x28] sm:$0xff] %v242
  %350 = vst [vmem:[%s5 + $0x30] sm:$0xff] %v283
  %351 = vst [vmem:[%s5 + $0x38] sm:$0xff] %v324
  %352 = vst [vmem:[%s5 + $0x40] sm:$0xff] %v204
  %353 = vst [vmem:[%s5 + $0x48] sm:$0xff] %v245
  %354 = vst [vmem:[%s5 + $0x50] sm:$0xff] %v286
  %355 = vst [vmem:[%s5 + $0x58] sm:$0xff] %v327
  %356 = vst [vmem:[%s5 + $0x60] sm:$0xff] %v207
  %357 = vst [vmem:[%s5 + $0x68] sm:$0xff] %v248
  %358 = vst [vmem:[%s5 + $0x70] sm:$0xff] %v289
  %359 = vst [vmem:[%s5 + $0x78] sm:$0xff] %v330
  %360 = vst [vmem:[%s5 + $0x80] sm:$0xff] %v210
  %361 = vst [vmem:[%s5 + $0x88] sm:$0xff] %v251
  %362 = vst [vmem:[%s5 + $0x90] sm:$0xff] %v292
  %363 = vst [vmem:[%s5 + $0x98] sm:$0xff] %v333
  %364 = vst [vmem:[%s5 + $0xa0] sm:$0xff] %v213
  %365 = vst [vmem:[%s5 + $0xa8] sm:$0xff] %v254
  %366 = vst [vmem:[%s5 + $0xb0] sm:$0xff] %v295
  %367 = vst [vmem:[%s5 + $0xb8] sm:$0xff] %v336
  %368 = vst [vmem:[%s5 + $0xc0] sm:$0xff] %v216
  %369 = vst [vmem:[%s5 + $0xc8] sm:$0xff] %v257
  %370 = vst [vmem:[%s5 + $0xd0] sm:$0xff] %v298
  %371 = vst [vmem:[%s5 + $0xd8] sm:$0xff] %v339
  %372 = vst [vmem:[%s5 + $0xe0] sm:$0xff] %v219
  %373 = vst [vmem:[%s5 + $0xe8] sm:$0xff] %v260
  %374 = vst [vmem:[%s5 + $0xf0] sm:$0xff] %v301
  %375 = vst [vmem:[%s5 + $0xf8] sm:$0xff] %v342
  // Predicated region
  $region22: #{lstm_forward.2} parent=0 // pred_check
    _
  $region23: #{lstm_forward.2} parent=0 // pred_check_branch
    %377 = sbr.rel (0) target = $region25
  $region24: #{lstm_forward.2} parent=0 // pred_region
    _
  $region25: #{lstm_forward.2} parent=0 // pred_fallthru
    _
  // Predicated region
  $region26: #{lstm_forward.2} parent=0 // pred_check
    _
  $region27: #{lstm_forward.2} parent=0 // pred_check_branch
    %379 = sbr.rel (0) target = $region29
  $region28: #{lstm_forward.2} parent=0 // pred_region
    _
  $region29: #{lstm_forward.2} parent=0 // pred_fallthru
    _

// kernel: lstm_forward.3
$region0: #{lstm_forward.3}
  #allocation0 [shape = 'u32[]', space=smem, size = 0x4, offset = 0x4, fixed_abs, tag = 'smem constant byte address 0x4 - core index']
  #allocation1 [shape = 'u32[72,128]{1,0:T(1,128)}', space=vmem, size = 0x9000, scoped, tag = 'internal scratch']
  #allocation2 [shape = 'f32[8,128]{1,0:T(8,128)}', space=vmem, size = 0x1000, scoped, tag = 'scratch operand']
  #allocation3 [shape = 'f32[8,128]{1,0:T(8,128)}', space=vmem, size = 0x1000, scoped, tag = 'scratch operand']
  #allocation4 [shape = 'f32[64,128]{1,0:T(8,128)}', space=vmem, size = 0x8000, scoped, tag = 'scratch operand']
  %s0 = inlined_call_operand.vmem [shape: f32[64,512], index: 0, kind: input, shape index: {}]
  %s1 = inlined_call_operand.vmem [shape: f32[8,128], index: 1, kind: input, shape index: {}]
  %s2 = inlined_call_operand.vmem [shape: f32[8,128], index: 2, kind: input, shape index: {}]
  %s3 = inlined_call_operand.vmem [shape: f32[128,512], index: 3, kind: input, shape index: {}]
  %s4 = inlined_call_operand.vmem [shape: f32[128,128], index: 4, kind: input, shape index: {}]
  %s5 = inlined_call_operand.vmem [shape: f32[1,128], index: 5, kind: input, shape index: {}]
  %s6 = inlined_call_operand.vmem [shape: f32[64,128], index: 6, kind: output, shape index: {0}]
  %s7 = inlined_call_operand.vmem [shape: f32[8,128], index: 7, kind: output, shape index: {1}]
  %s8 = inlined_call_operand.vmem [shape: f32[8,128], index: 8, kind: output, shape index: {2}]
  %9 = xla_tuple %s6, %s7, %s8
  %s10 = sld [smem:[#allocation0]]
  $region58: #{lstm_forward.3} parent=0
    _
  %s12 = ssub.s32 1, %s10
  %s13 = scalar_select 0, %s12, %s10
  // Predicated region
  $region2: #{lstm_forward.3} parent=0 // pred_check
    _
  $region3: #{lstm_forward.3} parent=0 // pred_check_branch
    %15 = sbr.rel (0) target = $region5
  $region4: #{lstm_forward.3} parent=0 // pred_region
    _
  $region5: #{lstm_forward.3} parent=0 // pred_fallthru
    _
  // Predicated region
  $region6: #{lstm_forward.3} parent=0 // pred_check
    _
  $region7: #{lstm_forward.3} parent=0 // pred_check_branch
    %17 = sbr.rel (0) target = $region9
  $region8: #{lstm_forward.3} parent=0 // pred_region
    _
  $region9: #{lstm_forward.3} parent=0 // pred_fallthru
    _
  // Predicated region
  $region10: #{lstm_forward.3} parent=0 // pred_check
    _
  $region11: #{lstm_forward.3} parent=0 // pred_check_branch
    %19 = sbr.rel (0) target = $region13
  $region12: #{lstm_forward.3} parent=0 // pred_region
    _
  $region13: #{lstm_forward.3} parent=0 // pred_fallthru
    _
  // Predicated region
  $region14: #{lstm_forward.3} parent=0 // pred_check
    _
  $region15: #{lstm_forward.3} parent=0 // pred_check_branch
    %21 = sbr.rel (0) target = $region17
  $region16: #{lstm_forward.3} parent=0 // pred_region
    _
  $region17: #{lstm_forward.3} parent=0 // pred_fallthru
    _
  // Predicated region
  $region18: #{lstm_forward.3} parent=0 // pred_check
    _
  $region19: #{lstm_forward.3} parent=0 // pred_check_branch
    %23 = sbr.rel (0) target = $region21
  $region20: #{lstm_forward.3} parent=0 // pred_region
    _
  $region21: #{lstm_forward.3} parent=0 // pred_fallthru
    _
  // Predicated region
  $region22: #{lstm_forward.3} parent=0 // pred_check
    _
  $region23: #{lstm_forward.3} parent=0 // pred_check_branch
    %25 = sbr.rel (0) target = $region25
  $region24: #{lstm_forward.3} parent=0 // pred_region
    _
  $region25: #{lstm_forward.3} parent=0 // pred_fallthru
    _
  %p26 = scmp.eq.s32.totalorder 0, 0
  // Predicated region
  $region26: #{lstm_forward.3} parent=0 // pred_check
    %p27 = pneg %p26
  $region27: #{lstm_forward.3} parent=0 // pred_check_branch
    %29 = sbr.rel (%p27) target = $region29
  $region28: #{lstm_forward.3} parent=0 // pred_region
    %v30 = vld [vmem:[%s1] sm:$0xff]
    %31 = vst [vmem:[#allocation2] sm:$0xff] %v30
    %v32 = vld [vmem:[%s2] sm:$0xff]
    %33 = vst [vmem:[#allocation3] sm:$0xff] %v32
  $region29: #{lstm_forward.3} parent=0 // pred_fallthru
    _
  %v34 = vld [vmem:[%s3] sm:$0xff]
  %v35 = vld [vmem:[%s3 + $0x8] sm:$0xff]
  %v36 = vld [vmem:[%s3 + $0x10] sm:$0xff]
  %v37 = vld [vmem:[%s3 + $0x18] sm:$0xff]
  %v38 = vld [vmem:[%s3 + $0x20] sm:$0xff]
  %v39 = vld [vmem:[%s3 + $0x28] sm:$0xff]
  %v40 = vld [vmem:[%s3 + $0x30] sm:$0xff]
  %v41 = vld [vmem:[%s3 + $0x38] sm:$0xff]
  %v42 = vld [vmem:[%s3 + $0x40] sm:$0xff]
  %v43 = vld [vmem:[%s3 + $0x48] sm:$0xff]
  %v44 = vld [vmem:[%s3 + $0x50] sm:$0xff]
  %v45 = vld [vmem:[%s3 + $0x58] sm:$0xff]
  %v46 = vld [vmem:[%s3 + $0x60] sm:$0xff]
  %v47 = vld [vmem:[%s3 + $0x68] sm:$0xff]
  %v48 = vld [vmem:[%s3 + $0x70] sm:$0xff]
  %v49 = vld [vmem:[%s3 + $0x78] sm:$0xff]
  %v50 = vld [vmem:[%s3 + $0x80] sm:$0xff]
  %v51 = vld [vmem:[%s3 + $0x88] sm:$0xff]
  %v52 = vld [vmem:[%s3 + $0x90] sm:$0xff]
  %v53 = vld [vmem:[%s3 + $0x98] sm:$0xff]
  %v54 = vld [vmem:[%s3 + $0xa0] sm:$0xff]
  %v55 = vld [vmem:[%s3 + $0xa8] sm:$0xff]
  %v56 = vld [vmem:[%s3 + $0xb0] sm:$0xff]
  %v57 = vld [vmem:[%s3 + $0xb8] sm:$0xff]
  %v58 = vld [vmem:[%s3 + $0xc0] sm:$0xff]
  %v59 = vld [vmem:[%s3 + $0xc8] sm:$0xff]
  %v60 = vld [vmem:[%s3 + $0xd0] sm:$0xff]
  %v61 = vld [vmem:[%s3 + $0xd8] sm:$0xff]
  %v62 = vld [vmem:[%s3 + $0xe0] sm:$0xff]
  %v63 = vld [vmem:[%s3 + $0xe8] sm:$0xff]
  %v64 = vld [vmem:[%s3 + $0xf0] sm:$0xff]
  %v65 = vld [vmem:[%s3 + $0xf8] sm:$0xff]
  %v66 = vld [vmem:[%s3 + $0x100] sm:$0xff]
  %v67 = vld [vmem:[%s3 + $0x108] sm:$0xff]
  %v68 = vld [vmem:[%s3 + $0x110] sm:$0xff]
  %v69 = vld [vmem:[%s3 + $0x118] sm:$0xff]
  %v70 = vld [vmem:[%s3 + $0x120] sm:$0xff]
  %v71 = vld [vmem:[%s3 + $0x128] sm:$0xff]
  %v72 = vld [vmem:[%s3 + $0x130] sm:$0xff]
  %v73 = vld [vmem:[%s3 + $0x138] sm:$0xff]
  %v74 = vld [vmem:[%s3 + $0x140] sm:$0xff]
  %v75 = vld [vmem:[%s3 + $0x148] sm:$0xff]
  %v76 = vld [vmem:[%s3 + $0x150] sm:$0xff]
  %v77 = vld [vmem:[%s3 + $0x158] sm:$0xff]
  %v78 = vld [vmem:[%s3 + $0x160] sm:$0xff]
  %v79 = vld [vmem:[%s3 + $0x168] sm:$0xff]
  %v80 = vld [vmem:[%s3 + $0x170] sm:$0xff]
  %v81 = vld [vmem:[%s3 + $0x178] sm:$0xff]
  %v82 = vld [vmem:[%s3 + $0x180] sm:$0xff]
  %v83 = vld [vmem:[%s3 + $0x188] sm:$0xff]
  %v84 = vld [vmem:[%s3 + $0x190] sm:$0xff]
  %v85 = vld [vmem:[%s3 + $0x198] sm:$0xff]
  %v86 = vld [vmem:[%s3 + $0x1a0] sm:$0xff]
  %v87 = vld [vmem:[%s3 + $0x1a8] sm:$0xff]
  %v88 = vld [vmem:[%s3 + $0x1b0] sm:$0xff]
  %v89 = vld [vmem:[%s3 + $0x1b8] sm:$0xff]
  %v90 = vld [vmem:[%s3 + $0x1c0] sm:$0xff]
  %v91 = vld [vmem:[%s3 + $0x1c8] sm:$0xff]
  %v92 = vld [vmem:[%s3 + $0x1d0] sm:$0xff]
  %v93 = vld [vmem:[%s3 + $0x1d8] sm:$0xff]
  %v94 = vld [vmem:[%s3 + $0x1e0] sm:$0xff]
  %v95 = vld [vmem:[%s3 + $0x1e8] sm:$0xff]
  %v96 = vld [vmem:[%s3 + $0x1f0] sm:$0xff]
  %v97 = vld [vmem:[%s3 + $0x1f8] sm:$0xff]
  %v98 = vld [vmem:[#allocation2] sm:$0xff]
  %v99 = vld [vmem:[#allocation3] sm:$0xff]
  %s100 = smul.u32 0, 4
  %s101 = smul.addr %s100, 8
  %s102 = scalar_lea.vmem %s0, %s101
  %v103 = vld [vmem:[%s102] sm:$0xff]
  %v104 = vld [vmem:[%s102 + $0x8] sm:$0xff]
  %v105 = vld [vmem:[%s102 + $0x10] sm:$0xff]
  %v106 = vld [vmem:[%s102 + $0x18] sm:$0xff]
  %107 = vmatpush.msra.mxu0 %v94
  %108 = vmatpush.msra.mxu0 %v90
  %109 = vmatpush.msra.mxu0 %v86
  %110 = vmatpush.msra.mxu0 %v82
  %111 = vmatpush.msra.mxu0 %v78
  %112 = vmatpush.msra.mxu0 %v74
  %113 = vmatpush.msra.mxu0 %v70
  %114 = vmatpush.msra.mxu0 %v66
  %115 = vmatpush.msra.mxu0 %v62
  %116 = vmatpush.msra.mxu0 %v58
  %117 = vmatpush.msra.mxu0 %v54
  %118 = vmatpush.msra.mxu0 %v50
  %119 = vmatpush.msra.mxu0 %v46
  %120 = vmatpush.msra.mxu0 %v42
  %121 = vmatpush.msra.mxu0 %v38
  %122 = vmatpush.msra.mxu0 %v34
  %123 = vmatmul.f32.gmra.mxu0 %v98
  %v124 = vpop.f32.mrf.mxu0
  %v125 = vadd.f32 0.0, %v124
  %126 = vdwg.mxu0
  %127 = vmatpush.msra.mxu0 %v95
  %128 = vmatpush.msra.mxu0 %v91
  %129 = vmatpush.msra.mxu0 %v87
  %130 = vmatpush.msra.mxu0 %v83
  %131 = vmatpush.msra.mxu0 %v79
  %132 = vmatpush.msra.mxu0 %v75
  %133 = vmatpush.msra.mxu0 %v71
  %134 = vmatpush.msra.mxu0 %v67
  %135 = vmatpush.msra.mxu0 %v63
  %136 = vmatpush.msra.mxu0 %v59
  %137 = vmatpush.msra.mxu0 %v55
  %138 = vmatpush.msra.mxu0 %v51
  %139 = vmatpush.msra.mxu0 %v47
  %140 = vmatpush.msra.mxu0 %v43
  %141 = vmatpush.msra.mxu0 %v39
  %142 = vmatpush.msra.mxu0 %v35
  %143 = vmatmul.f32.gmra.mxu0 %v98
  %v144 = vpop.f32.mrf.mxu0
  %v145 = vadd.f32 0.0, %v144
  %146 = vdwg.mxu0
  %147 = vmatpush.msra.mxu0 %v96
  %148 = vmatpush.msra.mxu0 %v92
  %149 = vmatpush.msra.mxu0 %v88
  %150 = vmatpush.msra.mxu0 %v84
  %151 = vmatpush.msra.mxu0 %v80
  %152 = vmatpush.msra.mxu0 %v76
  %153 = vmatpush.msra.mxu0 %v72
  %154 = vmatpush.msra.mxu0 %v68
  %155 = vmatpush.msra.mxu0 %v64
  %156 = vmatpush.msra.mxu0 %v60
  %157 = vmatpush.msra.mxu0 %v56
  %158 = vmatpush.msra.mxu0 %v52
  %159 = vmatpush.msra.mxu0 %v48
  %160 = vmatpush.msra.mxu0 %v44
  %161 = vmatpush.msra.mxu0 %v40
  %162 = vmatpush.msra.mxu0 %v36
  %163 = vmatmul.f32.gmra.mxu0 %v98
  %v164 = vpop.f32.mrf.mxu0
  %v165 = vadd.f32 0.0, %v164
  %166 = vdwg.mxu0
  %167 = vmatpush.msra.mxu0 %v97
  %168 = vmatpush.msra.mxu0 %v93
  %169 = vmatpush.msra.mxu0 %v89
  %170 = vmatpush.msra.mxu0 %v85
  %171 = vmatpush.msra.mxu0 %v81
  %172 = vmatpush.msra.mxu0 %v77
  %173 = vmatpush.msra.mxu0 %v73
  %174 = vmatpush.msra.mxu0 %v69
  %175 = vmatpush.msra.mxu0 %v65
  %176 = vmatpush.msra.mxu0 %v61
  %177 = vmatpush.msra.mxu0 %v57
  %178 = vmatpush.msra.mxu0 %v53
  %179 = vmatpush.msra.mxu0 %v49
  %180 = vmatpush.msra.mxu0 %v45
  %181 = vmatpush.msra.mxu0 %v41
  %182 = vmatpush.msra.mxu0 %v37
  %183 = vmatmul.f32.gmra.mxu0 %v98
  %v184 = vpop.f32.mrf.mxu0
  %v185 = vadd.f32 0.0, %v184
  %186 = vdwg.mxu0
  %v187 = vadd.f32 %v103, %v125
  %v188 = vadd.f32 %v104, %v145
  %v189 = vadd.f32 %v105, %v165
  %v190 = vadd.f32 %v106, %v185
  %v191 = vxor.u32 %v187, 2147483648
  %v192 = vmul.f32 %v191, 1.442695
  %v193 = vpow.pop %v192
  %v194 = vadd.f32 %v193, 1.0
  %v195 = vrcp.pop %v194
  %v196 = vmul.f32 %v194, %v195
  %v197 = vsub.f32 1.0, %v196
  %v198 = vmul.f32 %v195, %v197
  %v199 = vadd.f32 %v195, %v198
  %vm200 = vweird.f32 %v194
  %vm201 = vweird.f32 %v195
  %vm202 = vmor %vm200, %vm201
  %v203 = vsel %vm202, %v195, %v199
  %v204 = vand.u32 2147483647, %v194
  %vm205 = vcmp.eq.f32.partialorder %v204, 8.507059e+37
  %v206 = vand.u32 %v194, 2147483648
  %v207 = vor.u32 1.1754944e-38, %v206
  %v208 = vsel %vm205, %v207, %v203
  %v209 = vmul.f32 1.0, %v208
  %v210 = vxor.u32 %v188, 2147483648
  %v211 = vmul.f32 %v210, 1.442695
  %v212 = vpow.pop %v211
  %v213 = vadd.f32 %v212, 1.0
  %v214 = vrcp.pop %v213
  %v215 = vmul.f32 %v213, %v214
  %v216 = vsub.f32 1.0, %v215
  %v217 = vmul.f32 %v214, %v216
  %v218 = vadd.f32 %v214, %v217
  %vm219 = vweird.f32 %v213
  %vm220 = vweird.f32 %v214
  %vm221 = vmor %vm219, %vm220
  %v222 = vsel %vm221, %v214, %v218
  %v223 = vand.u32 2147483647, %v213
  %vm224 = vcmp.eq.f32.partialorder %v223, 8.507059e+37
  %v225 = vand.u32 %v213, 2147483648
  %v226 = vor.u32 1.1754944e-38, %v225
  %v227 = vsel %vm224, %v226, %v222
  %v228 = vmul.f32 1.0, %v227
  %v229 = vtanh.pop %v189
  %v230 = vxor.u32 %v190, 2147483648
  %v231 = vmul.f32 %v230, 1.442695
  %v232 = vpow.pop %v231
  %v233 = vadd.f32 %v232, 1.0
  %v234 = vrcp.pop %v233
  %v235 = vmul.f32 %v233, %v234
  %v236 = vsub.f32 1.0, %v235
  %v237 = vmul.f32 %v234, %v236
  %v238 = vadd.f32 %v234, %v237
  %vm239 = vweird.f32 %v233
  %vm240 = vweird.f32 %v234
  %vm241 = vmor %vm239, %vm240
  %v242 = vsel %vm241, %v234, %v238
  %v243 = vand.u32 2147483647, %v233
  %vm244 = vcmp.eq.f32.partialorder %v243, 8.507059e+37
  %v245 = vand.u32 %v233, 2147483648
  %v246 = vor.u32 1.1754944e-38, %v245
  %v247 = vsel %vm244, %v246, %v242
  %v248 = vmul.f32 1.0, %v247
  %v249 = vmul.f32 %v228, %v99
  %v250 = vmul.f32 %v209, %v229
  %v251 = vadd.f32 %v249, %v250
  %v252 = vtanh.pop %v251
  %v253 = vmul.f32 %v248, %v252
  %254 = vst [vmem:[#allocation4] sm:$0xff] %v253
  %s255 = smul.u32 1, 4
  %s256 = smul.addr %s255, 8
  %s257 = scalar_lea.vmem %s0, %s256
  %v258 = vld [vmem:[%s257] sm:$0xff]
  %v259 = vld [vmem:[%s257 + $0x8] sm:$0xff]
  %v260 = vld [vmem:[%s257 + $0x10] sm:$0xff]
  %v261 = vld [vmem:[%s257 + $0x18] sm:$0xff]
  %262 = vmatpush.msra.mxu0 %v94
  %263 = vmatpush.msra.mxu0 %v90
  %264 = vmatpush.msra.mxu0 %v86
  %265 = vmatpush.msra.mxu0 %v82
  %266 = vmatpush.msra.mxu0 %v78
  %267 = vmatpush.msra.mxu0 %v74
  %268 = vmatpush.msra.mxu0 %v70
  %269 = vmatpush.msra.mxu0 %v66
  %270 = vmatpush.msra.mxu0 %v62
  %271 = vmatpush.msra.mxu0 %v58
  %272 = vmatpush.msra.mxu0 %v54
  %273 = vmatpush.msra.mxu0 %v50
  %274 = vmatpush.msra.mxu0 %v46
  %275 = vmatpush.msra.mxu0 %v42
  %276 = vmatpush.msra.mxu0 %v38
  %277 = vmatpush.msra.mxu0 %v34
  %278 = vmatmul.f32.gmra.mxu0 %v253
  %v279 = vpop.f32.mrf.mxu0
  %v280 = vadd.f32 0.0, %v279
  %281 = vdwg.mxu0
  %282 = vmatpush.msra.mxu0 %v95
  %283 = vmatpush.msra.mxu0 %v91
  %284 = vmatpush.msra.mxu0 %v87
  %285 = vmatpush.msra.mxu0 %v83
  %286 = vmatpush.msra.mxu0 %v79
  %287 = vmatpush.msra.mxu0 %v75
  %288 = vmatpush.msra.mxu0 %v71
  %289 = vmatpush.msra.mxu0 %v67
  %290 = vmatpush.msra.mxu0 %v63
  %291 = vmatpush.msra.mxu0 %v59
  %292 = vmatpush.msra.mxu0 %v55
  %293 = vmatpush.msra.mxu0 %v51
  %294 = vmatpush.msra.mxu0 %v47
  %295 = vmatpush.msra.mxu0 %v43
  %296 = vmatpush.msra.mxu0 %v39
  %297 = vmatpush.msra.mxu0 %v35
  %298 = vmatmul.f32.gmra.mxu0 %v253
  %v299 = vpop.f32.mrf.mxu0
  %v300 = vadd.f32 0.0, %v299
  %301 = vdwg.mxu0
  %302 = vmatpush.msra.mxu0 %v96
  %303 = vmatpush.msra.mxu0 %v92
  %304 = vmatpush.msra.mxu0 %v88
  %305 = vmatpush.msra.mxu0 %v84
  %306 = vmatpush.msra.mxu0 %v80
  %307 = vmatpush.msra.mxu0 %v76
  %308 = vmatpush.msra.mxu0 %v72
  %309 = vmatpush.msra.mxu0 %v68
  %310 = vmatpush.msra.mxu0 %v64
  %311 = vmatpush.msra.mxu0 %v60
  %312 = vmatpush.msra.mxu0 %v56
  %313 = vmatpush.msra.mxu0 %v52
  %314 = vmatpush.msra.mxu0 %v48
  %315 = vmatpush.msra.mxu0 %v44
  %316 = vmatpush.msra.mxu0 %v40
  %317 = vmatpush.msra.mxu0 %v36
  %318 = vmatmul.f32.gmra.mxu0 %v253
  %v319 = vpop.f32.mrf.mxu0
  %v320 = vadd.f32 0.0, %v319
  %321 = vdwg.mxu0
  %322 = vmatpush.msra.mxu0 %v97
  %323 = vmatpush.msra.mxu0 %v93
  %324 = vmatpush.msra.mxu0 %v89
  %325 = vmatpush.msra.mxu0 %v85
  %326 = vmatpush.msra.mxu0 %v81
  %327 = vmatpush.msra.mxu0 %v77
  %328 = vmatpush.msra.mxu0 %v73
  %329 = vmatpush.msra.mxu0 %v69
  %330 = vmatpush.msra.mxu0 %v65
  %331 = vmatpush.msra.mxu0 %v61
  %332 = vmatpush.msra.mxu0 %v57
  %333 = vmatpush.msra.mxu0 %v53
  %334 = vmatpush.msra.mxu0 %v49
  %335 = vmatpush.msra.mxu0 %v45
  %336 = vmatpush.msra.mxu0 %v41
  %337 = vmatpush.msra.mxu0 %v37
  %338 = vmatmul.f32.gmra.mxu0 %v253
  %v339 = vpop.f32.mrf.mxu0
  %v340 = vadd.f32 0.0, %v339
  %341 = vdwg.mxu0
  %v342 = vadd.f32 %v258, %v280
  %v343 = vadd.f32 %v259, %v300
  %v344 = vadd.f32 %v260, %v320
  %v345 = vadd.f32 %v261, %v340
  %v346 = vxor.u32 %v342, 2147483648
  %v347 = vmul.f32 %v346, 1.442695
  %v348 = vpow.pop %v347
  %v349 = vadd.f32 %v348, 1.0
  %v350 = vrcp.pop %v349
  %v351 = vmul.f32 %v349, %v350
  %v352 = vsub.f32 1.0, %v351
  %v353 = vmul.f32 %v350, %v352
  %v354 = vadd.f32 %v350, %v353
  %vm355 = vweird.f32 %v349
  %vm356 = vweird.f32 %v350
  %vm357 = vmor %vm355, %vm356
  %v358 = vsel %vm357, %v350, %v354
  %v359 = vand.u32 2147483647, %v349
  %vm360 = vcmp.eq.f32.partialorder %v359, 8.507059e+37
  %v361 = vand.u32 %v349, 2147483648
  %v362 = vor.u32 1.1754944e-38, %v361
  %v363 = vsel %vm360, %v362, %v358
  %v364 = vmul.f32 1.0, %v363
  %v365 = vxor.u32 %v343, 2147483648
  %v366 = vmul.f32 %v365, 1.442695
  %v367 = vpow.pop %v366
  %v368 = vadd.f32 %v367, 1.0
  %v369 = vrcp.pop %v368
  %v370 = vmul.f32 %v368, %v369
  %v371 = vsub.f32 1.0, %v370
  %v372 = vmul.f32 %v369, %v371
  %v373 = vadd.f32 %v369, %v372
  %vm374 = vweird.f32 %v368
  %vm375 = vweird.f32 %v369
  %vm376 = vmor %vm374, %vm375
  %v377 = vsel %vm376, %v369, %v373
  %v378 = vand.u32 2147483647, %v368
  %vm379 = vcmp.eq.f32.partialorder %v378, 8.507059e+37
  %v380 = vand.u32 %v368, 2147483648
  %v381 = vor.u32 1.1754944e-38, %v380
  %v382 = vsel %vm379, %v381, %v377
  %v383 = vmul.f32 1.0, %v382
  %v384 = vtanh.pop %v344
  %v385 = vxor.u32 %v345, 2147483648
  %v386 = vmul.f32 %v385, 1.442695
  %v387 = vpow.pop %v386
  %v388 = vadd.f32 %v387, 1.0
  %v389 = vrcp.pop %v388
  %v390 = vmul.f32 %v388, %v389
  %v391 = vsub.f32 1.0, %v390
  %v392 = vmul.f32 %v389, %v391
  %v393 = vadd.f32 %v389, %v392
  %vm394 = vweird.f32 %v388
  %vm395 = vweird.f32 %v389
  %vm396 = vmor %vm394, %vm395
  %v397 = vsel %vm396, %v389, %v393
  %v398 = vand.u32 2147483647, %v388
  %vm399 = vcmp.eq.f32.partialorder %v398, 8.507059e+37
  %v400 = vand.u32 %v388, 2147483648
  %v401 = vor.u32 1.1754944e-38, %v400
  %v402 = vsel %vm399, %v401, %v397
  %v403 = vmul.f32 1.0, %v402
  %v404 = vmul.f32 %v383, %v251
  %v405 = vmul.f32 %v364, %v384
  %v406 = vadd.f32 %v404, %v405
  %v407 = vtanh.pop %v406
  %v408 = vmul.f32 %v403, %v407
  %s409 = scalar_lea.vmem [#allocation4], 8
  %410 = vst [vmem:[%s409] sm:$0xff] %v408
  %s411 = smul.u32 2, 4
  %s412 = smul.addr %s411, 8
  %s413 = scalar_lea.vmem %s0, %s412
  %v414 = vld [vmem:[%s413] sm:$0xff]
  %v415 = vld [vmem:[%s413 + $0x8] sm:$0xff]
  %v416 = vld [vmem:[%s413 + $0x10] sm:$0xff]
  %v417 = vld [vmem:[%s413 + $0x18] sm:$0xff]
  %418 = vmatpush.msra.mxu0 %v94
  %419 = vmatpush.msra.mxu0 %v90
  %420 = vmatpush.msra.mxu0 %v86
  %421 = vmatpush.msra.mxu0 %v82
  %422 = vmatpush.msra.mxu0 %v78
  %423 = vmatpush.msra.mxu0 %v74
  %424 = vmatpush.msra.mxu0 %v70
  %425 = vmatpush.msra.mxu0 %v66
  %426 = vmatpush.msra.mxu0 %v62
  %427 = vmatpush.msra.mxu0 %v58
  %428 = vmatpush.msra.mxu0 %v54
  %429 = vmatpush.msra.mxu0 %v50
  %430 = vmatpush.msra.mxu0 %v46
  %431 = vmatpush.msra.mxu0 %v42
  %432 = vmatpush.msra.mxu0 %v38
  %433 = vmatpush.msra.mxu0 %v34
  %434 = vmatmul.f32.gmra.mxu0 %v408
  %v435 = vpop.f32.mrf.mxu0
  %v436 = vadd.f32 0.0, %v435
  %437 = vdwg.mxu0
  %438 = vmatpush.msra.mxu0 %v95
  %439 = vmatpush.msra.mxu0 %v91
  %440 = vmatpush.msra.mxu0 %v87
  %441 = vmatpush.msra.mxu0 %v83
  %442 = vmatpush.msra.mxu0 %v79
  %443 = vmatpush.msra.mxu0 %v75
  %444 = vmatpush.msra.mxu0 %v71
  %445 = vmatpush.msra.mxu0 %v67
  %446 = vmatpush.msra.mxu0 %v63
  %447 = vmatpush.msra.mxu0 %v59
  %448 = vmatpush.msra.mxu0 %v55
  %449 = vmatpush.msra.mxu0 %v51
  %450 = vmatpush.msra.mxu0 %v47
  %451 = vmatpush.msra.mxu0 %v43
  %452 = vmatpush.msra.mxu0 %v39
  %453 = vmatpush.msra.mxu0 %v35
  %454 = vmatmul.f32.gmra.mxu0 %v408
  %v455 = vpop.f32.mrf.mxu0
  %v456 = vadd.f32 0.0, %v455
  %457 = vdwg.mxu0
  %458 = vmatpush.msra.mxu0 %v96
  %459 = vmatpush.msra.mxu0 %v92
  %460 = vmatpush.msra.mxu0 %v88
  %461 = vmatpush.msra.mxu0 %v84
  %462 = vmatpush.msra.mxu0 %v80
  %463 = vmatpush.msra.mxu0 %v76
  %464 = vmatpush.msra.mxu0 %v72
  %465 = vmatpush.msra.mxu0 %v68
  %466 = vmatpush.msra.mxu0 %v64
  %467 = vmatpush.msra.mxu0 %v60
  %468 = vmatpush.msra.mxu0 %v56
  %469 = vmatpush.msra.mxu0 %v52
  %470 = vmatpush.msra.mxu0 %v48
  %471 = vmatpush.msra.mxu0 %v44
  %472 = vmatpush.msra.mxu0 %v40
  %473 = vmatpush.msra.mxu0 %v36
  %474 = vmatmul.f32.gmra.mxu0 %v408
  %v475 = vpop.f32.mrf.mxu0
  %v476 = vadd.f32 0.0, %v475
  %477 = vdwg.mxu0
  %478 = vmatpush.msra.mxu0 %v97
  %479 = vmatpush.msra.mxu0 %v93
  %480 = vmatpush.msra.mxu0 %v89
  %481 = vmatpush.msra.mxu0 %v85
  %482 = vmatpush.msra.mxu0 %v81
  %483 = vmatpush.msra.mxu0 %v77
  %484 = vmatpush.msra.mxu0 %v73
  %485 = vmatpush.msra.mxu0 %v69
  %486 = vmatpush.msra.mxu0 %v65
  %487 = vmatpush.msra.mxu0 %v61
  %488 = vmatpush.msra.mxu0 %v57
  %489 = vmatpush.msra.mxu0 %v53
  %490 = vmatpush.msra.mxu0 %v49
  %491 = vmatpush.msra.mxu0 %v45
  %492 = vmatpush.msra.mxu0 %v41
  %493 = vmatpush.msra.mxu0 %v37
  %494 = vmatmul.f32.gmra.mxu0 %v408
  %v495 = vpop.f32.mrf.mxu0
  %v496 = vadd.f32 0.0, %v495
  %497 = vdwg.mxu0
  %v498 = vadd.f32 %v414, %v436
  %v499 = vadd.f32 %v415, %v456
  %v500 = vadd.f32 %v416, %v476
  %v501 = vadd.f32 %v417, %v496
  %v502 = vxor.u32 %v498, 2147483648
  %v503 = vmul.f32 %v502, 1.442695
  %v504 = vpow.pop %v503
  %v505 = vadd.f32 %v504, 1.0
  %v506 = vrcp.pop %v505
  %v507 = vmul.f32 %v505, %v506
  %v508 = vsub.f32 1.0, %v507
  %v509 = vmul.f32 %v506, %v508
  %v510 = vadd.f32 %v506, %v509
  %vm511 = vweird.f32 %v505
  %vm512 = vweird.f32 %v506
  %vm513 = vmor %vm511, %vm512
  %v514 = vsel %vm513, %v506, %v510
  %v515 = vand.u32 2147483647, %v505
  %vm516 = vcmp.eq.f32.partialorder %v515, 8.507059e+37
  %v517 = vand.u32 %v505, 2147483648
  %v518 = vor.u32 1.1754944e-38, %v517
  %v519 = vsel %vm516, %v518, %v514
  %v520 = vmul.f32 1.0, %v519
  %v521 = vxor.u32 %v499, 2147483648
  %v522 = vmul.f32 %v521, 1.442695
  %v523 = vpow.pop %v522
  %v524 = vadd.f32 %v523, 1.0
  %v525 = vrcp.pop %v524
  %v526 = vmul.f32 %v524, %v525
  %v527 = vsub.f32 1.0, %v526
  %v528 = vmul.f32 %v525, %v527
  %v529 = vadd.f32 %v525, %v528
  %vm530 = vweird.f32 %v524
  %vm531 = vweird.f32 %v525
  %vm532 = vmor %vm530, %vm531
  %v533 = vsel %vm532, %v525, %v529
  %v534 = vand.u32 2147483647, %v524
  %vm535 = vcmp.eq.f32.partialorder %v534, 8.507059e+37
  %v536 = vand.u32 %v524, 2147483648
  %v537 = vor.u32 1.1754944e-38, %v536
  %v538 = vsel %vm535, %v537, %v533
  %v539 = vmul.f32 1.0, %v538
  %v540 = vtanh.pop %v500
  %v541 = vxor.u32 %v501, 2147483648
  %v542 = vmul.f32 %v541, 1.442695
  %v543 = vpow.pop %v542
  %v544 = vadd.f32 %v543, 1.0
  %v545 = vrcp.pop %v544
  %v546 = vmul.f32 %v544, %v545
  %v547 = vsub.f32 1.0, %v546
  %v548 = vmul.f32 %v545, %v547
  %v549 = vadd.f32 %v545, %v548
  %vm550 = vweird.f32 %v544
  %vm551 = vweird.f32 %v545
  %vm552 = vmor %vm550, %vm551
  %v553 = vsel %vm552, %v545, %v549
  %v554 = vand.u32 2147483647, %v544
  %vm555 = vcmp.eq.f32.partialorder %v554, 8.507059e+37
  %v556 = vand.u32 %v544, 2147483648
  %v557 = vor.u32 1.1754944e-38, %v556
  %v558 = vsel %vm555, %v557, %v553
  %v559 = vmul.f32 1.0, %v558
  %v560 = vmul.f32 %v539, %v406
  %v561 = vmul.f32 %v520, %v540
  %v562 = vadd.f32 %v560, %v561
  %v563 = vtanh.pop %v562
  %v564 = vmul.f32 %v559, %v563
  %s565 = scalar_lea.vmem [#allocation4], 16
  %566 = vst [vmem:[%s565] sm:$0xff] %v564
  %s567 = smul.u32 3, 4
  %s568 = smul.addr %s567, 8
  %s569 = scalar_lea.vmem %s0, %s568
  %v570 = vld [vmem:[%s569] sm:$0xff]
  %v571 = vld [vmem:[%s569 + $0x8] sm:$0xff]
  %v572 = vld [vmem:[%s569 + $0x10] sm:$0xff]
  %v573 = vld [vmem:[%s569 + $0x18] sm:$0xff]
  %574 = vmatpush.msra.mxu0 %v94
  %575 = vmatpush.msra.mxu0 %v90
  %576 = vmatpush.msra.mxu0 %v86
  %577 = vmatpush.msra.mxu0 %v82
  %578 = vmatpush.msra.mxu0 %v78
  %579 = vmatpush.msra.mxu0 %v74
  %580 = vmatpush.msra.mxu0 %v70
  %581 = vmatpush.msra.mxu0 %v66
  %582 = vmatpush.msra.mxu0 %v62
  %583 = vmatpush.msra.mxu0 %v58
  %584 = vmatpush.msra.mxu0 %v54
  %585 = vmatpush.msra.mxu0 %v50
  %586 = vmatpush.msra.mxu0 %v46
  %587 = vmatpush.msra.mxu0 %v42
  %588 = vmatpush.msra.mxu0 %v38
  %589 = vmatpush.msra.mxu0 %v34
  %590 = vmatmul.f32.gmra.mxu0 %v564
  %v591 = vpop.f32.mrf.mxu0
  %v592 = vadd.f32 0.0, %v591
  %593 = vdwg.mxu0
  %594 = vmatpush.msra.mxu0 %v95
  %595 = vmatpush.msra.mxu0 %v91
  %596 = vmatpush.msra.mxu0 %v87
  %597 = vmatpush.msra.mxu0 %v83
  %598 = vmatpush.msra.mxu0 %v79
  %599 = vmatpush.msra.mxu0 %v75
  %600 = vmatpush.msra.mxu0 %v71
  %601 = vmatpush.msra.mxu0 %v67
  %602 = vmatpush.msra.mxu0 %v63
  %603 = vmatpush.msra.mxu0 %v59
  %604 = vmatpush.msra.mxu0 %v55
  %605 = vmatpush.msra.mxu0 %v51
  %606 = vmatpush.msra.mxu0 %v47
  %607 = vmatpush.msra.mxu0 %v43
  %608 = vmatpush.msra.mxu0 %v39
  %609 = vmatpush.msra.mxu0 %v35
  %610 = vmatmul.f32.gmra.mxu0 %v564
  %v611 = vpop.f32.mrf.mxu0
  %v612 = vadd.f32 0.0, %v611
  %613 = vdwg.mxu0
  %614 = vmatpush.msra.mxu0 %v96
  %615 = vmatpush.msra.mxu0 %v92
  %616 = vmatpush.msra.mxu0 %v88
  %617 = vmatpush.msra.mxu0 %v84
  %618 = vmatpush.msra.mxu0 %v80
  %619 = vmatpush.msra.mxu0 %v76
  %620 = vmatpush.msra.mxu0 %v72
  %621 = vmatpush.msra.mxu0 %v68
  %622 = vmatpush.msra.mxu0 %v64
  %623 = vmatpush.msra.mxu0 %v60
  %624 = vmatpush.msra.mxu0 %v56
  %625 = vmatpush.msra.mxu0 %v52
  %626 = vmatpush.msra.mxu0 %v48
  %627 = vmatpush.msra.mxu0 %v44
  %628 = vmatpush.msra.mxu0 %v40
  %629 = vmatpush.msra.mxu0 %v36
  %630 = vmatmul.f32.gmra.mxu0 %v564
  %v631 = vpop.f32.mrf.mxu0
  %v632 = vadd.f32 0.0, %v631
  %633 = vdwg.mxu0
  %634 = vmatpush.msra.mxu0 %v97
  %635 = vmatpush.msra.mxu0 %v93
  %636 = vmatpush.msra.mxu0 %v89
  %637 = vmatpush.msra.mxu0 %v85
  %638 = vmatpush.msra.mxu0 %v81
  %639 = vmatpush.msra.mxu0 %v77
  %640 = vmatpush.msra.mxu0 %v73
  %641 = vmatpush.msra.mxu0 %v69
  %642 = vmatpush.msra.mxu0 %v65
  %643 = vmatpush.msra.mxu0 %v61
  %644 = vmatpush.msra.mxu0 %v57
  %645 = vmatpush.msra.mxu0 %v53
  %646 = vmatpush.msra.mxu0 %v49
  %647 = vmatpush.msra.mxu0 %v45
  %648 = vmatpush.msra.mxu0 %v41
  %649 = vmatpush.msra.mxu0 %v37
  %650 = vmatmul.f32.gmra.mxu0 %v564
  %v651 = vpop.f32.mrf.mxu0
  %v652 = vadd.f32 0.0, %v651
  %653 = vdwg.mxu0
  %v654 = vadd.f32 %v570, %v592
  %v655 = vadd.f32 %v571, %v612
  %v656 = vadd.f32 %v572, %v632
  %v657 = vadd.f32 %v573, %v652
  %v658 = vxor.u32 %v654, 2147483648
  %v659 = vmul.f32 %v658, 1.442695
  %v660 = vpow.pop %v659
  %v661 = vadd.f32 %v660, 1.0
  %v662 = vrcp.pop %v661
  %v663 = vmul.f32 %v661, %v662
  %v664 = vsub.f32 1.0, %v663
  %v665 = vmul.f32 %v662, %v664
  %v666 = vadd.f32 %v662, %v665
  %vm667 = vweird.f32 %v661
  %vm668 = vweird.f32 %v662
  %vm669 = vmor %vm667, %vm668
  %v670 = vsel %vm669, %v662, %v666
  %v671 = vand.u32 2147483647, %v661
  %vm672 = vcmp.eq.f32.partialorder %v671, 8.507059e+37
  %v673 = vand.u32 %v661, 2147483648
  %v674 = vor.u32 1.1754944e-38, %v673
  %v675 = vsel %vm672, %v674, %v670
  %v676 = vmul.f32 1.0, %v675
  %v677 = vxor.u32 %v655, 2147483648
  %v678 = vmul.f32 %v677, 1.442695
  %v679 = vpow.pop %v678
  %v680 = vadd.f32 %v679, 1.0
  %v681 = vrcp.pop %v680
  %v682 = vmul.f32 %v680, %v681
  %v683 = vsub.f32 1.0, %v682
  %v684 = vmul.f32 %v681, %v683
  %v685 = vadd.f32 %v681, %v684
  %vm686 = vweird.f32 %v680
  %vm687 = vweird.f32 %v681
  %vm688 = vmor %vm686, %vm687
  %v689 = vsel %vm688, %v681, %v685
  %v690 = vand.u32 2147483647, %v680
  %vm691 = vcmp.eq.f32.partialorder %v690, 8.507059e+37
  %v692 = vand.u32 %v680, 2147483648
  %v693 = vor.u32 1.1754944e-38, %v692
  %v694 = vsel %vm691, %v693, %v689
  %v695 = vmul.f32 1.0, %v694
  %v696 = vtanh.pop %v656
  %v697 = vxor.u32 %v657, 2147483648
  %v698 = vmul.f32 %v697, 1.442695
  %v699 = vpow.pop %v698
  %v700 = vadd.f32 %v699, 1.0
  %v701 = vrcp.pop %v700
  %v702 = vmul.f32 %v700, %v701
  %v703 = vsub.f32 1.0, %v702
  %v704 = vmul.f32 %v701, %v703
  %v705 = vadd.f32 %v701, %v704
  %vm706 = vweird.f32 %v700
  %vm707 = vweird.f32 %v701
  %vm708 = vmor %vm706, %vm707
  %v709 = vsel %vm708, %v701, %v705
  %v710 = vand.u32 2147483647, %v700
  %vm711 = vcmp.eq.f32.partialorder %v710, 8.507059e+37
  %v712 = vand.u32 %v700, 2147483648
  %v713 = vor.u32 1.1754944e-38, %v712
  %v714 = vsel %vm711, %v713, %v709
  %v715 = vmul.f32 1.0, %v714
  %v716 = vmul.f32 %v695, %v562
  %v717 = vmul.f32 %v676, %v696
  %v718 = vadd.f32 %v716, %v717
  %v719 = vtanh.pop %v718
  %v720 = vmul.f32 %v715, %v719
  %s721 = scalar_lea.vmem [#allocation4], 24
  %722 = vst [vmem:[%s721] sm:$0xff] %v720
  %s723 = smul.u32 4, 4
  %s724 = smul.addr %s723, 8
  %s725 = scalar_lea.vmem %s0, %s724
  %v726 = vld [vmem:[%s725] sm:$0xff]
  %v727 = vld [vmem:[%s725 + $0x8] sm:$0xff]
  %v728 = vld [vmem:[%s725 + $0x10] sm:$0xff]
  %v729 = vld [vmem:[%s725 + $0x18] sm:$0xff]
  %730 = vmatpush.msra.mxu0 %v94
  %731 = vmatpush.msra.mxu0 %v90
  %732 = vmatpush.msra.mxu0 %v86
  %733 = vmatpush.msra.mxu0 %v82
  %734 = vmatpush.msra.mxu0 %v78
  %735 = vmatpush.msra.mxu0 %v74
  %736 = vmatpush.msra.mxu0 %v70
  %737 = vmatpush.msra.mxu0 %v66
  %738 = vmatpush.msra.mxu0 %v62
  %739 = vmatpush.msra.mxu0 %v58
  %740 = vmatpush.msra.mxu0 %v54
  %741 = vmatpush.msra.mxu0 %v50
  %742 = vmatpush.msra.mxu0 %v46
  %743 = vmatpush.msra.mxu0 %v42
  %744 = vmatpush.msra.mxu0 %v38
  %745 = vmatpush.msra.mxu0 %v34
  %746 = vmatmul.f32.gmra.mxu0 %v720
  %v747 = vpop.f32.mrf.mxu0
  %v748 = vadd.f32 0.0, %v747
  %749 = vdwg.mxu0
  %750 = vmatpush.msra.mxu0 %v95
  %751 = vmatpush.msra.mxu0 %v91
  %752 = vmatpush.msra.mxu0 %v87
  %753 = vmatpush.msra.mxu0 %v83
  %754 = vmatpush.msra.mxu0 %v79
  %755 = vmatpush.msra.mxu0 %v75
  %756 = vmatpush.msra.mxu0 %v71
  %757 = vmatpush.msra.mxu0 %v67
  %758 = vmatpush.msra.mxu0 %v63
  %759 = vmatpush.msra.mxu0 %v59
  %760 = vmatpush.msra.mxu0 %v55
  %761 = vmatpush.msra.mxu0 %v51
  %762 = vmatpush.msra.mxu0 %v47
  %763 = vmatpush.msra.mxu0 %v43
  %764 = vmatpush.msra.mxu0 %v39
  %765 = vmatpush.msra.mxu0 %v35
  %766 = vmatmul.f32.gmra.mxu0 %v720
  %v767 = vpop.f32.mrf.mxu0
  %v768 = vadd.f32 0.0, %v767
  %769 = vdwg.mxu0
  %770 = vmatpush.msra.mxu0 %v96
  %771 = vmatpush.msra.mxu0 %v92
  %772 = vmatpush.msra.mxu0 %v88
  %773 = vmatpush.msra.mxu0 %v84
  %774 = vmatpush.msra.mxu0 %v80
  %775 = vmatpush.msra.mxu0 %v76
  %776 = vmatpush.msra.mxu0 %v72
  %777 = vmatpush.msra.mxu0 %v68
  %778 = vmatpush.msra.mxu0 %v64
  %779 = vmatpush.msra.mxu0 %v60
  %780 = vmatpush.msra.mxu0 %v56
  %781 = vmatpush.msra.mxu0 %v52
  %782 = vmatpush.msra.mxu0 %v48
  %783 = vmatpush.msra.mxu0 %v44
  %784 = vmatpush.msra.mxu0 %v40
  %785 = vmatpush.msra.mxu0 %v36
  %786 = vmatmul.f32.gmra.mxu0 %v720
  %v787 = vpop.f32.mrf.mxu0
  %v788 = vadd.f32 0.0, %v787
  %789 = vdwg.mxu0
  %790 = vmatpush.msra.mxu0 %v97
  %791 = vmatpush.msra.mxu0 %v93
  %792 = vmatpush.msra.mxu0 %v89
  %793 = vmatpush.msra.mxu0 %v85
  %794 = vmatpush.msra.mxu0 %v81
  %795 = vmatpush.msra.mxu0 %v77
  %796 = vmatpush.msra.mxu0 %v73
  %797 = vmatpush.msra.mxu0 %v69
  %798 = vmatpush.msra.mxu0 %v65
  %799 = vmatpush.msra.mxu0 %v61
  %800 = vmatpush.msra.mxu0 %v57
  %801 = vmatpush.msra.mxu0 %v53
  %802 = vmatpush.msra.mxu0 %v49
  %803 = vmatpush.msra.mxu0 %v45
  %804 = vmatpush.msra.mxu0 %v41
  %805 = vmatpush.msra.mxu0 %v37
  %806 = vmatmul.f32.gmra.mxu0 %v720
  %v807 = vpop.f32.mrf.mxu0
  %v808 = vadd.f32 0.0, %v807
  %809 = vdwg.mxu0
  %v810 = vadd.f32 %v726, %v748
  %v811 = vadd.f32 %v727, %v768
  %v812 = vadd.f32 %v728, %v788
  %v813 = vadd.f32 %v729, %v808
  %v814 = vxor.u32 %v810, 2147483648
  %v815 = vmul.f32 %v814, 1.442695
  %v816 = vpow.pop %v815
  %v817 = vadd.f32 %v816, 1.0
  %v818 = vrcp.pop %v817
  %v819 = vmul.f32 %v817, %v818
  %v820 = vsub.f32 1.0, %v819
  %v821 = vmul.f32 %v818, %v820
  %v822 = vadd.f32 %v818, %v821
  %vm823 = vweird.f32 %v817
  %vm824 = vweird.f32 %v818
  %vm825 = vmor %vm823, %vm824
  %v826 = vsel %vm825, %v818, %v822
  %v827 = vand.u32 2147483647, %v817
  %vm828 = vcmp.eq.f32.partialorder %v827, 8.507059e+37
  %v829 = vand.u32 %v817, 2147483648
  %v830 = vor.u32 1.1754944e-38, %v829
  %v831 = vsel %vm828, %v830, %v826
  %v832 = vmul.f32 1.0, %v831
  %v833 = vxor.u32 %v811, 2147483648
  %v834 = vmul.f32 %v833, 1.442695
  %v835 = vpow.pop %v834
  %v836 = vadd.f32 %v835, 1.0
  %v837 = vrcp.pop %v836
  %v838 = vmul.f32 %v836, %v837
  %v839 = vsub.f32 1.0, %v838
  %v840 = vmul.f32 %v837, %v839
  %v841 = vadd.f32 %v837, %v840
  %vm842 = vweird.f32 %v836
  %vm843 = vweird.f32 %v837
  %vm844 = vmor %vm842, %vm843
  %v845 = vsel %vm844, %v837, %v841
  %v846 = vand.u32 2147483647, %v836
  %vm847 = vcmp.eq.f32.partialorder %v846, 8.507059e+37
  %v848 = vand.u32 %v836, 2147483648
  %v849 = vor.u32 1.1754944e-38, %v848
  %v850 = vsel %vm847, %v849, %v845
  %v851 = vmul.f32 1.0, %v850
  %v852 = vtanh.pop %v812
  %v853 = vxor.u32 %v813, 2147483648
  %v854 = vmul.f32 %v853, 1.442695
  %v855 = vpow.pop %v854
  %v856 = vadd.f32 %v855, 1.0
  %v857 = vrcp.pop %v856
  %v858 = vmul.f32 %v856, %v857
  %v859 = vsub.f32 1.0, %v858
  %v860 = vmul.f32 %v857, %v859
  %v861 = vadd.f32 %v857, %v860
  %vm862 = vweird.f32 %v856
  %vm863 = vweird.f32 %v857
  %vm864 = vmor %vm862, %vm863
  %v865 = vsel %vm864, %v857, %v861
  %v866 = vand.u32 2147483647, %v856
  %vm867 = vcmp.eq.f32.partialorder %v866, 8.507059e+37
  %v868 = vand.u32 %v856, 2147483648
  %v869 = vor.u32 1.1754944e-38, %v868
  %v870 = vsel %vm867, %v869, %v865
  %v871 = vmul.f32 1.0, %v870
  %v872 = vmul.f32 %v851, %v718
  %v873 = vmul.f32 %v832, %v852
  %v874 = vadd.f32 %v872, %v873
  %v875 = vtanh.pop %v874
  %v876 = vmul.f32 %v871, %v875
  %s877 = scalar_lea.vmem [#allocation4], 32
  %878 = vst [vmem:[%s877] sm:$0xff] %v876
  %s879 = smul.u32 5, 4
  %s880 = smul.addr %s879, 8
  %s881 = scalar_lea.vmem %s0, %s880
  %v882 = vld [vmem:[%s881] sm:$0xff]
  %v883 = vld [vmem:[%s881 + $0x8] sm:$0xff]
  %v884 = vld [vmem:[%s881 + $0x10] sm:$0xff]
  %v885 = vld [vmem:[%s881 + $0x18] sm:$0xff]
  %886 = vmatpush.msra.mxu0 %v94
  %887 = vmatpush.msra.mxu0 %v90
  %888 = vmatpush.msra.mxu0 %v86
  %889 = vmatpush.msra.mxu0 %v82
  %890 = vmatpush.msra.mxu0 %v78
  %891 = vmatpush.msra.mxu0 %v74
  %892 = vmatpush.msra.mxu0 %v70
  %893 = vmatpush.msra.mxu0 %v66
  %894 = vmatpush.msra.mxu0 %v62
  %895 = vmatpush.msra.mxu0 %v58
  %896 = vmatpush.msra.mxu0 %v54
  %897 = vmatpush.msra.mxu0 %v50
  %898 = vmatpush.msra.mxu0 %v46
  %899 = vmatpush.msra.mxu0 %v42
  %900 = vmatpush.msra.mxu0 %v38
  %901 = vmatpush.msra.mxu0 %v34
  %902 = vmatmul.f32.gmra.mxu0 %v876
  %v903 = vpop.f32.mrf.mxu0
  %v904 = vadd.f32 0.0, %v903
  %905 = vdwg.mxu0
  %906 = vmatpush.msra.mxu0 %v95
  %907 = vmatpush.msra.mxu0 %v91
  %908 = vmatpush.msra.mxu0 %v87
  %909 = vmatpush.msra.mxu0 %v83
  %910 = vmatpush.msra.mxu0 %v79
  %911 = vmatpush.msra.mxu0 %v75
  %912 = vmatpush.msra.mxu0 %v71
  %913 = vmatpush.msra.mxu0 %v67
  %914 = vmatpush.msra.mxu0 %v63
  %915 = vmatpush.msra.mxu0 %v59
  %916 = vmatpush.msra.mxu0 %v55
  %917 = vmatpush.msra.mxu0 %v51
  %918 = vmatpush.msra.mxu0 %v47
  %919 = vmatpush.msra.mxu0 %v43
  %920 = vmatpush.msra.mxu0 %v39
  %921 = vmatpush.msra.mxu0 %v35
  %922 = vmatmul.f32.gmra.mxu0 %v876
  %v923 = vpop.f32.mrf.mxu0
  %v924 = vadd.f32 0.0, %v923
  %925 = vdwg.mxu0
  %926 = vmatpush.msra.mxu0 %v96
  %927 = vmatpush.msra.mxu0 %v92
  %928 = vmatpush.msra.mxu0 %v88
  %929 = vmatpush.msra.mxu0 %v84
  %930 = vmatpush.msra.mxu0 %v80
  %931 = vmatpush.msra.mxu0 %v76
  %932 = vmatpush.msra.mxu0 %v72
  %933 = vmatpush.msra.mxu0 %v68
  %934 = vmatpush.msra.mxu0 %v64
  %935 = vmatpush.msra.mxu0 %v60
  %936 = vmatpush.msra.mxu0 %v56
  %937 = vmatpush.msra.mxu0 %v52
  %938 = vmatpush.msra.mxu0 %v48
  %939 = vmatpush.msra.mxu0 %v44
  %940 = vmatpush.msra.mxu0 %v40
  %941 = vmatpush.msra.mxu0 %v36
  %942 = vmatmul.f32.gmra.mxu0 %v876
  %v943 = vpop.f32.mrf.mxu0
  %v944 = vadd.f32 0.0, %v943
  %945 = vdwg.mxu0
  %946 = vmatpush.msra.mxu0 %v97
  %947 = vmatpush.msra.mxu0 %v93
  %948 = vmatpush.msra.mxu0 %v89
  %949 = vmatpush.msra.mxu0 %v85
  %950 = vmatpush.msra.mxu0 %v81
  %951 = vmatpush.msra.mxu0 %v77
  %952 = vmatpush.msra.mxu0 %v73
  %953 = vmatpush.msra.mxu0 %v69
  %954 = vmatpush.msra.mxu0 %v65
  %955 = vmatpush.msra.mxu0 %v61
  %956 = vmatpush.msra.mxu0 %v57
  %957 = vmatpush.msra.mxu0 %v53
  %958 = vmatpush.msra.mxu0 %v49
  %959 = vmatpush.msra.mxu0 %v45
  %960 = vmatpush.msra.mxu0 %v41
  %961 = vmatpush.msra.mxu0 %v37
  %962 = vmatmul.f32.gmra.mxu0 %v876
  %v963 = vpop.f32.mrf.mxu0
  %v964 = vadd.f32 0.0, %v963
  %965 = vdwg.mxu0
  %v966 = vadd.f32 %v882, %v904
  %v967 = vadd.f32 %v883, %v924
  %v968 = vadd.f32 %v884, %v944
  %v969 = vadd.f32 %v885, %v964
  %v970 = vxor.u32 %v966, 2147483648
  %v971 = vmul.f32 %v970, 1.442695
  %v972 = vpow.pop %v971
  %v973 = vadd.f32 %v972, 1.0
  %v974 = vrcp.pop %v973
  %v975 = vmul.f32 %v973, %v974
  %v976 = vsub.f32 1.0, %v975
  %v977 = vmul.f32 %v974, %v976
  %v978 = vadd.f32 %v974, %v977
  %vm979 = vweird.f32 %v973
  %vm980 = vweird.f32 %v974
  %vm981 = vmor %vm979, %vm980
  %v982 = vsel %vm981, %v974, %v978
  %v983 = vand.u32 2147483647, %v973
  %vm984 = vcmp.eq.f32.partialorder %v983, 8.507059e+37
  %v985 = vand.u32 %v973, 2147483648
  %v986 = vor.u32 1.1754944e-38, %v985
  %v987 = vsel %vm984, %v986, %v982
  %v988 = vmul.f32 1.0, %v987
  %v989 = vxor.u32 %v967, 2147483648
  %v990 = vmul.f32 %v989, 1.442695
  %v991 = vpow.pop %v990
  %v992 = vadd.f32 %v991, 1.0
  %v993 = vrcp.pop %v992
  %v994 = vmul.f32 %v992, %v993
  %v995 = vsub.f32 1.0, %v994
  %v996 = vmul.f32 %v993, %v995
  %v997 = vadd.f32 %v993, %v996
  %vm998 = vweird.f32 %v992
  %vm999 = vweird.f32 %v993
  %vm1000 = vmor %vm998, %vm999
  %v1001 = vsel %vm1000, %v993, %v997
  %v1002 = vand.u32 2147483647, %v992
  %vm1003 = vcmp.eq.f32.partialorder %v1002, 8.507059e+37
  %v1004 = vand.u32 %v992, 2147483648
  %v1005 = vor.u32 1.1754944e-38, %v1004
  %v1006 = vsel %vm1003, %v1005, %v1001
  %v1007 = vmul.f32 1.0, %v1006
  %v1008 = vtanh.pop %v968
  %v1009 = vxor.u32 %v969, 2147483648
  %v1010 = vmul.f32 %v1009, 1.442695
  %v1011 = vpow.pop %v1010
  %v1012 = vadd.f32 %v1011, 1.0
  %v1013 = vrcp.pop %v1012
  %v1014 = vmul.f32 %v1012, %v1013
  %v1015 = vsub.f32 1.0, %v1014
  %v1016 = vmul.f32 %v1013, %v1015
  %v1017 = vadd.f32 %v1013, %v1016
  %vm1018 = vweird.f32 %v1012
  %vm1019 = vweird.f32 %v1013
  %vm1020 = vmor %vm1018, %vm1019
  %v1021 = vsel %vm1020, %v1013, %v1017
  %v1022 = vand.u32 2147483647, %v1012
  %vm1023 = vcmp.eq.f32.partialorder %v1022, 8.507059e+37
  %v1024 = vand.u32 %v1012, 2147483648
  %v1025 = vor.u32 1.1754944e-38, %v1024
  %v1026 = vsel %vm1023, %v1025, %v1021
  %v1027 = vmul.f32 1.0, %v1026
  %v1028 = vmul.f32 %v1007, %v874
  %v1029 = vmul.f32 %v988, %v1008
  %v1030 = vadd.f32 %v1028, %v1029
  %v1031 = vtanh.pop %v1030
  %v1032 = vmul.f32 %v1027, %v1031
  %s1033 = scalar_lea.vmem [#allocation4], 40
  %1034 = vst [vmem:[%s1033] sm:$0xff] %v1032
  %s1035 = smul.u32 6, 4
  %s1036 = smul.addr %s1035, 8
  %s1037 = scalar_lea.vmem %s0, %s1036
  %v1038 = vld [vmem:[%s1037] sm:$0xff]
  %v1039 = vld [vmem:[%s1037 + $0x8] sm:$0xff]
  %v1040 = vld [vmem:[%s1037 + $0x10] sm:$0xff]
  %v1041 = vld [vmem:[%s1037 + $0x18] sm:$0xff]
  %1042 = vmatpush.msra.mxu0 %v94
  %1043 = vmatpush.msra.mxu0 %v90
  %1044 = vmatpush.msra.mxu0 %v86
  %1045 = vmatpush.msra.mxu0 %v82
  %1046 = vmatpush.msra.mxu0 %v78
  %1047 = vmatpush.msra.mxu0 %v74
  %1048 = vmatpush.msra.mxu0 %v70
  %1049 = vmatpush.msra.mxu0 %v66
  %1050 = vmatpush.msra.mxu0 %v62
  %1051 = vmatpush.msra.mxu0 %v58
  %1052 = vmatpush.msra.mxu0 %v54
  %1053 = vmatpush.msra.mxu0 %v50
  %1054 = vmatpush.msra.mxu0 %v46
  %1055 = vmatpush.msra.mxu0 %v42
  %1056 = vmatpush.msra.mxu0 %v38
  %1057 = vmatpush.msra.mxu0 %v34
  %1058 = vmatmul.f32.gmra.mxu0 %v1032
  %v1059 = vpop.f32.mrf.mxu0
  %v1060 = vadd.f32 0.0, %v1059
  %1061 = vdwg.mxu0
  %1062 = vmatpush.msra.mxu0 %v95
  %1063 = vmatpush.msra.mxu0 %v91
  %1064 = vmatpush.msra.mxu0 %v87
  %1065 = vmatpush.msra.mxu0 %v83
  %1066 = vmatpush.msra.mxu0 %v79
  %1067 = vmatpush.msra.mxu0 %v75
  %1068 = vmatpush.msra.mxu0 %v71
  %1069 = vmatpush.msra.mxu0 %v67
  %1070 = vmatpush.msra.mxu0 %v63
  %1071 = vmatpush.msra.mxu0 %v59
  %1072 = vmatpush.msra.mxu0 %v55
  %1073 = vmatpush.msra.mxu0 %v51
  %1074 = vmatpush.msra.mxu0 %v47
  %1075 = vmatpush.msra.mxu0 %v43
  %1076 = vmatpush.msra.mxu0 %v39
  %1077 = vmatpush.msra.mxu0 %v35
  %1078 = vmatmul.f32.gmra.mxu0 %v1032
  %v1079 = vpop.f32.mrf.mxu0
  %v1080 = vadd.f32 0.0, %v1079
  %1081 = vdwg.mxu0
  %1082 = vmatpush.msra.mxu0 %v96
  %1083 = vmatpush.msra.mxu0 %v92
  %1084 = vmatpush.msra.mxu0 %v88
  %1085 = vmatpush.msra.mxu0 %v84
  %1086 = vmatpush.msra.mxu0 %v80
  %1087 = vmatpush.msra.mxu0 %v76
  %1088 = vmatpush.msra.mxu0 %v72
  %1089 = vmatpush.msra.mxu0 %v68
  %1090 = vmatpush.msra.mxu0 %v64
  %1091 = vmatpush.msra.mxu0 %v60
  %1092 = vmatpush.msra.mxu0 %v56
  %1093 = vmatpush.msra.mxu0 %v52
  %1094 = vmatpush.msra.mxu0 %v48
  %1095 = vmatpush.msra.mxu0 %v44
  %1096 = vmatpush.msra.mxu0 %v40
  %1097 = vmatpush.msra.mxu0 %v36
  %1098 = vmatmul.f32.gmra.mxu0 %v1032
  %v1099 = vpop.f32.mrf.mxu0
  %v1100 = vadd.f32 0.0, %v1099
  %1101 = vdwg.mxu0
  %1102 = vmatpush.msra.mxu0 %v97
  %1103 = vmatpush.msra.mxu0 %v93
  %1104 = vmatpush.msra.mxu0 %v89
  %1105 = vmatpush.msra.mxu0 %v85
  %1106 = vmatpush.msra.mxu0 %v81
  %1107 = vmatpush.msra.mxu0 %v77
  %1108 = vmatpush.msra.mxu0 %v73
  %1109 = vmatpush.msra.mxu0 %v69
  %1110 = vmatpush.msra.mxu0 %v65
  %1111 = vmatpush.msra.mxu0 %v61
  %1112 = vmatpush.msra.mxu0 %v57
  %1113 = vmatpush.msra.mxu0 %v53
  %1114 = vmatpush.msra.mxu0 %v49
  %1115 = vmatpush.msra.mxu0 %v45
  %1116 = vmatpush.msra.mxu0 %v41
  %1117 = vmatpush.msra.mxu0 %v37
  %1118 = vmatmul.f32.gmra.mxu0 %v1032
  %v1119 = vpop.f32.mrf.mxu0
  %v1120 = vadd.f32 0.0, %v1119
  %1121 = vdwg.mxu0
  %v1122 = vadd.f32 %v1038, %v1060
  %v1123 = vadd.f32 %v1039, %v1080
  %v1124 = vadd.f32 %v1040, %v1100
  %v1125 = vadd.f32 %v1041, %v1120
  %v1126 = vxor.u32 %v1122, 2147483648
  %v1127 = vmul.f32 %v1126, 1.442695
  %v1128 = vpow.pop %v1127
  %v1129 = vadd.f32 %v1128, 1.0
  %v1130 = vrcp.pop %v1129
  %v1131 = vmul.f32 %v1129, %v1130
  %v1132 = vsub.f32 1.0, %v1131
  %v1133 = vmul.f32 %v1130, %v1132
  %v1134 = vadd.f32 %v1130, %v1133
  %vm1135 = vweird.f32 %v1129
  %vm1136 = vweird.f32 %v1130
  %vm1137 = vmor %vm1135, %vm1136
  %v1138 = vsel %vm1137, %v1130, %v1134
  %v1139 = vand.u32 2147483647, %v1129
  %vm1140 = vcmp.eq.f32.partialorder %v1139, 8.507059e+37
  %v1141 = vand.u32 %v1129, 2147483648
  %v1142 = vor.u32 1.1754944e-38, %v1141
  %v1143 = vsel %vm1140, %v1142, %v1138
  %v1144 = vmul.f32 1.0, %v1143
  %v1145 = vxor.u32 %v1123, 2147483648
  %v1146 = vmul.f32 %v1145, 1.442695
  %v1147 = vpow.pop %v1146
  %v1148 = vadd.f32 %v1147, 1.0
  %v1149 = vrcp.pop %v1148
  %v1150 = vmul.f32 %v1148, %v1149
  %v1151 = vsub.f32 1.0, %v1150
  %v1152 = vmul.f32 %v1149, %v1151
  %v1153 = vadd.f32 %v1149, %v1152
  %vm1154 = vweird.f32 %v1148
  %vm1155 = vweird.f32 %v1149
  %vm1156 = vmor %vm1154, %vm1155
  %v1157 = vsel %vm1156, %v1149, %v1153
  %v1158 = vand.u32 2147483647, %v1148
  %vm1159 = vcmp.eq.f32.partialorder %v1158, 8.507059e+37
  %v1160 = vand.u32 %v1148, 2147483648
  %v1161 = vor.u32 1.1754944e-38, %v1160
  %v1162 = vsel %vm1159, %v1161, %v1157
  %v1163 = vmul.f32 1.0, %v1162
  %v1164 = vtanh.pop %v1124
  %v1165 = vxor.u32 %v1125, 2147483648
  %v1166 = vmul.f32 %v1165, 1.442695
  %v1167 = vpow.pop %v1166
  %v1168 = vadd.f32 %v1167, 1.0
  %v1169 = vrcp.pop %v1168
  %v1170 = vmul.f32 %v1168, %v1169
  %v1171 = vsub.f32 1.0, %v1170
  %v1172 = vmul.f32 %v1169, %v1171
  %v1173 = vadd.f32 %v1169, %v1172
  %vm1174 = vweird.f32 %v1168
  %vm1175 = vweird.f32 %v1169
  %vm1176 = vmor %vm1174, %vm1175
  %v1177 = vsel %vm1176, %v1169, %v1173
  %v1178 = vand.u32 2147483647, %v1168
  %vm1179 = vcmp.eq.f32.partialorder %v1178, 8.507059e+37
  %v1180 = vand.u32 %v1168, 2147483648
  %v1181 = vor.u32 1.1754944e-38, %v1180
  %v1182 = vsel %vm1179, %v1181, %v1177
  %v1183 = vmul.f32 1.0, %v1182
  %v1184 = vmul.f32 %v1163, %v1030
  %v1185 = vmul.f32 %v1144, %v1164
  %v1186 = vadd.f32 %v1184, %v1185
  %v1187 = vtanh.pop %v1186
  %v1188 = vmul.f32 %v1183, %v1187
  %s1189 = scalar_lea.vmem [#allocation4], 48
  %1190 = vst [vmem:[%s1189] sm:$0xff] %v1188
  %s1191 = smul.u32 7, 4
  %s1192 = smul.addr %s1191, 8
  %s1193 = scalar_lea.vmem %s0, %s1192
  %v1194 = vld [vmem:[%s1193] sm:$0xff]
  %v1195 = vld [vmem:[%s1193 + $0x8] sm:$0xff]
  %v1196 = vld [vmem:[%s1193 + $0x10] sm:$0xff]
  %v1197 = vld [vmem:[%s1193 + $0x18] sm:$0xff]
  %1198 = vmatpush.msra.mxu0 %v94
  %1199 = vmatpush.msra.mxu0 %v90
  %1200 = vmatpush.msra.mxu0 %v86
  %1201 = vmatpush.msra.mxu0 %v82
  %1202 = vmatpush.msra.mxu0 %v78
  %1203 = vmatpush.msra.mxu0 %v74
  %1204 = vmatpush.msra.mxu0 %v70
  %1205 = vmatpush.msra.mxu0 %v66
  %1206 = vmatpush.msra.mxu0 %v62
  %1207 = vmatpush.msra.mxu0 %v58
  %1208 = vmatpush.msra.mxu0 %v54
  %1209 = vmatpush.msra.mxu0 %v50
  %1210 = vmatpush.msra.mxu0 %v46
  %1211 = vmatpush.msra.mxu0 %v42
  %1212 = vmatpush.msra.mxu0 %v38
  %1213 = vmatpush.msra.mxu0 %v34
  %1214 = vmatmul.f32.gmra.mxu0 %v1188
  %v1215 = vpop.f32.mrf.mxu0
  %v1216 = vadd.f32 0.0, %v1215
  %1217 = vdwg.mxu0
  %1218 = vmatpush.msra.mxu0 %v95
  %1219 = vmatpush.msra.mxu0 %v91
  %1220 = vmatpush.msra.mxu0 %v87
  %1221 = vmatpush.msra.mxu0 %v83
  %1222 = vmatpush.msra.mxu0 %v79
  %1223 = vmatpush.msra.mxu0 %v75
  %1224 = vmatpush.msra.mxu0 %v71
  %1225 = vmatpush.msra.mxu0 %v67
  %1226 = vmatpush.msra.mxu0 %v63
  %1227 = vmatpush.msra.mxu0 %v59
  %1228 = vmatpush.msra.mxu0 %v55
  %1229 = vmatpush.msra.mxu0 %v51
  %1230 = vmatpush.msra.mxu0 %v47
  %1231 = vmatpush.msra.mxu0 %v43
  %1232 = vmatpush.msra.mxu0 %v39
  %1233 = vmatpush.msra.mxu0 %v35
  %1234 = vmatmul.f32.gmra.mxu0 %v1188
  %v1235 = vpop.f32.mrf.mxu0
  %v1236 = vadd.f32 0.0, %v1235
  %1237 = vdwg.mxu0
  %1238 = vmatpush.msra.mxu0 %v96
  %1239 = vmatpush.msra.mxu0 %v92
  %1240 = vmatpush.msra.mxu0 %v88
  %1241 = vmatpush.msra.mxu0 %v84
  %1242 = vmatpush.msra.mxu0 %v80
  %1243 = vmatpush.msra.mxu0 %v76
  %1244 = vmatpush.msra.mxu0 %v72
  %1245 = vmatpush.msra.mxu0 %v68
  %1246 = vmatpush.msra.mxu0 %v64
  %1247 = vmatpush.msra.mxu0 %v60
  %1248 = vmatpush.msra.mxu0 %v56
  %1249 = vmatpush.msra.mxu0 %v52
  %1250 = vmatpush.msra.mxu0 %v48
  %1251 = vmatpush.msra.mxu0 %v44
  %1252 = vmatpush.msra.mxu0 %v40
  %1253 = vmatpush.msra.mxu0 %v36
  %1254 = vmatmul.f32.gmra.mxu0 %v1188
  %v1255 = vpop.f32.mrf.mxu0
  %v1256 = vadd.f32 0.0, %v1255
  %1257 = vdwg.mxu0
  %1258 = vmatpush.msra.mxu0 %v97
  %1259 = vmatpush.msra.mxu0 %v93
  %1260 = vmatpush.msra.mxu0 %v89
  %1261 = vmatpush.msra.mxu0 %v85
  %1262 = vmatpush.msra.mxu0 %v81
  %1263 = vmatpush.msra.mxu0 %v77
  %1264 = vmatpush.msra.mxu0 %v73
  %1265 = vmatpush.msra.mxu0 %v69
  %1266 = vmatpush.msra.mxu0 %v65
  %1267 = vmatpush.msra.mxu0 %v61
  %1268 = vmatpush.msra.mxu0 %v57
  %1269 = vmatpush.msra.mxu0 %v53
  %1270 = vmatpush.msra.mxu0 %v49
  %1271 = vmatpush.msra.mxu0 %v45
  %1272 = vmatpush.msra.mxu0 %v41
  %1273 = vmatpush.msra.mxu0 %v37
  %1274 = vmatmul.f32.gmra.mxu0 %v1188
  %v1275 = vpop.f32.mrf.mxu0
  %v1276 = vadd.f32 0.0, %v1275
  %1277 = vdwg.mxu0
  %v1278 = vadd.f32 %v1194, %v1216
  %v1279 = vadd.f32 %v1195, %v1236
  %v1280 = vadd.f32 %v1196, %v1256
  %v1281 = vadd.f32 %v1197, %v1276
  %v1282 = vxor.u32 %v1278, 2147483648
  %v1283 = vmul.f32 %v1282, 1.442695
  %v1284 = vpow.pop %v1283
  %v1285 = vadd.f32 %v1284, 1.0
  %v1286 = vrcp.pop %v1285
  %v1287 = vmul.f32 %v1285, %v1286
  %v1288 = vsub.f32 1.0, %v1287
  %v1289 = vmul.f32 %v1286, %v1288
  %v1290 = vadd.f32 %v1286, %v1289
  %vm1291 = vweird.f32 %v1285
  %vm1292 = vweird.f32 %v1286
  %vm1293 = vmor %vm1291, %vm1292
  %v1294 = vsel %vm1293, %v1286, %v1290
  %v1295 = vand.u32 2147483647, %v1285
  %vm1296 = vcmp.eq.f32.partialorder %v1295, 8.507059e+37
  %v1297 = vand.u32 %v1285, 2147483648
  %v1298 = vor.u32 1.1754944e-38, %v1297
  %v1299 = vsel %vm1296, %v1298, %v1294
  %v1300 = vmul.f32 1.0, %v1299
  %v1301 = vxor.u32 %v1279, 2147483648
  %v1302 = vmul.f32 %v1301, 1.442695
  %v1303 = vpow.pop %v1302
  %v1304 = vadd.f32 %v1303, 1.0
  %v1305 = vrcp.pop %v1304
  %v1306 = vmul.f32 %v1304, %v1305
  %v1307 = vsub.f32 1.0, %v1306
  %v1308 = vmul.f32 %v1305, %v1307
  %v1309 = vadd.f32 %v1305, %v1308
  %vm1310 = vweird.f32 %v1304
  %vm1311 = vweird.f32 %v1305
  %vm1312 = vmor %vm1310, %vm1311
  %v1313 = vsel %vm1312, %v1305, %v1309
  %v1314 = vand.u32 2147483647, %v1304
  %vm1315 = vcmp.eq.f32.partialorder %v1314, 8.507059e+37
  %v1316 = vand.u32 %v1304, 2147483648
  %v1317 = vor.u32 1.1754944e-38, %v1316
  %v1318 = vsel %vm1315, %v1317, %v1313
  %v1319 = vmul.f32 1.0, %v1318
  %v1320 = vtanh.pop %v1280
  %v1321 = vxor.u32 %v1281, 2147483648
  %v1322 = vmul.f32 %v1321, 1.442695
  %v1323 = vpow.pop %v1322
  %v1324 = vadd.f32 %v1323, 1.0
  %v1325 = vrcp.pop %v1324
  %v1326 = vmul.f32 %v1324, %v1325
  %v1327 = vsub.f32 1.0, %v1326
  %v1328 = vmul.f32 %v1325, %v1327
  %v1329 = vadd.f32 %v1325, %v1328
  %vm1330 = vweird.f32 %v1324
  %vm1331 = vweird.f32 %v1325
  %vm1332 = vmor %vm1330, %vm1331
  %v1333 = vsel %vm1332, %v1325, %v1329
  %v1334 = vand.u32 2147483647, %v1324
  %vm1335 = vcmp.eq.f32.partialorder %v1334, 8.507059e+37
  %v1336 = vand.u32 %v1324, 2147483648
  %v1337 = vor.u32 1.1754944e-38, %v1336
  %v1338 = vsel %vm1335, %v1337, %v1333
  %v1339 = vmul.f32 1.0, %v1338
  %v1340 = vmul.f32 %v1319, %v1186
  %v1341 = vmul.f32 %v1300, %v1320
  %v1342 = vadd.f32 %v1340, %v1341
  %v1343 = vtanh.pop %v1342
  %v1344 = vmul.f32 %v1339, %v1343
  %s1345 = scalar_lea.vmem [#allocation4], 56
  %1346 = vst [vmem:[%s1345] sm:$0xff] %v1344
  %1347 = vst [vmem:[#allocation2] sm:$0xff] %v1344
  %1348 = vst [vmem:[#allocation3] sm:$0xff] %v1342
  %v1349 = vld [vmem:[#allocation4] sm:$0xff]
  %v1350 = vld [vmem:[#allocation4 + $0x8] sm:$0xff]
  %v1351 = vld [vmem:[#allocation4 + $0x10] sm:$0xff]
  %v1352 = vld [vmem:[#allocation4 + $0x18] sm:$0xff]
  %v1353 = vld [vmem:[#allocation4 + $0x20] sm:$0xff]
  %v1354 = vld [vmem:[#allocation4 + $0x28] sm:$0xff]
  %v1355 = vld [vmem:[#allocation4 + $0x30] sm:$0xff]
  %v1356 = vld [vmem:[#allocation4 + $0x38] sm:$0xff]
  %v1357 = vld [vmem:[%s4] sm:$0xff]
  %v1358 = vld [vmem:[%s4 + $0x8] sm:$0xff]
  %v1359 = vld [vmem:[%s4 + $0x10] sm:$0xff]
  %v1360 = vld [vmem:[%s4 + $0x18] sm:$0xff]
  %v1361 = vld [vmem:[%s4 + $0x20] sm:$0xff]
  %v1362 = vld [vmem:[%s4 + $0x28] sm:$0xff]
  %v1363 = vld [vmem:[%s4 + $0x30] sm:$0xff]
  %v1364 = vld [vmem:[%s4 + $0x38] sm:$0xff]
  %v1365 = vld [vmem:[%s4 + $0x40] sm:$0xff]
  %v1366 = vld [vmem:[%s4 + $0x48] sm:$0xff]
  %v1367 = vld [vmem:[%s4 + $0x50] sm:$0xff]
  %v1368 = vld [vmem:[%s4 + $0x58] sm:$0xff]
  %v1369 = vld [vmem:[%s4 + $0x60] sm:$0xff]
  %v1370 = vld [vmem:[%s4 + $0x68] sm:$0xff]
  %v1371 = vld [vmem:[%s4 + $0x70] sm:$0xff]
  %v1372 = vld [vmem:[%s4 + $0x78] sm:$0xff]
  %v1373 = vld [vmem:[%s5] sm:$0x1]
  %v1375 = vperm.slane %v1373, 0
  %1377 = vmatpush.msra.mxu0 %v1372
  %1378 = vmatpush.msra.mxu0 %v1371
  %1379 = vmatpush.msra.mxu0 %v1370
  %1380 = vmatpush.msra.mxu0 %v1369
  %1381 = vmatpush.msra.mxu0 %v1368
  %1382 = vmatpush.msra.mxu0 %v1367
  %1383 = vmatpush.msra.mxu0 %v1366
  %1384 = vmatpush.msra.mxu0 %v1365
  %1385 = vmatpush.msra.mxu0 %v1364
  %1386 = vmatpush.msra.mxu0 %v1363
  %1387 = vmatpush.msra.mxu0 %v1362
  %1388 = vmatpush.msra.mxu0 %v1361
  %1389 = vmatpush.msra.mxu0 %v1360
  %1390 = vmatpush.msra.mxu0 %v1359
  %1391 = vmatpush.msra.mxu0 %v1358
  %1392 = vmatpush.msra.mxu0 %v1357
  %1393 = vmatmul.f32.gmra.mxu0 %v1349
  %v1394 = vpop.f32.mrf.mxu0
  %v1395 = vadd.f32 %v1375, %v1394
  %1396 = vmatmul.f32.gmra.mxu0 %v1350
  %v1397 = vpop.f32.mrf.mxu0
  %v1398 = vadd.f32 %v1375, %v1397
  %1399 = vmatmul.f32.gmra.mxu0 %v1351
  %v1400 = vpop.f32.mrf.mxu0
  %v1401 = vadd.f32 %v1375, %v1400
  %1402 = vmatmul.f32.gmra.mxu0 %v1352
  %v1403 = vpop.f32.mrf.mxu0
  %v1404 = vadd.f32 %v1375, %v1403
  %1405 = vmatmul.f32.gmra.mxu0 %v1353
  %v1406 = vpop.f32.mrf.mxu0
  %v1407 = vadd.f32 %v1375, %v1406
  %1408 = vmatmul.f32.gmra.mxu0 %v1354
  %v1409 = vpop.f32.mrf.mxu0
  %v1410 = vadd.f32 %v1375, %v1409
  %1411 = vmatmul.f32.gmra.mxu0 %v1355
  %v1412 = vpop.f32.mrf.mxu0
  %v1413 = vadd.f32 %v1375, %v1412
  %1414 = vmatmul.f32.gmra.mxu0 %v1356
  %v1415 = vpop.f32.mrf.mxu0
  %v1416 = vadd.f32 %v1375, %v1415
  %1417 = vdwg.mxu0
  %1418 = vst [vmem:[%s6] sm:$0xff] %v1395
  %1419 = vst [vmem:[%s6 + $0x8] sm:$0xff] %v1398
  %1420 = vst [vmem:[%s6 + $0x10] sm:$0xff] %v1401
  %1421 = vst [vmem:[%s6 + $0x18] sm:$0xff] %v1404
  %1422 = vst [vmem:[%s6 + $0x20] sm:$0xff] %v1407
  %1423 = vst [vmem:[%s6 + $0x28] sm:$0xff] %v1410
  %1424 = vst [vmem:[%s6 + $0x30] sm:$0xff] %v1413
  %1425 = vst [vmem:[%s6 + $0x38] sm:$0xff] %v1416
  // Predicated region
  $region30: #{lstm_forward.3} parent=0 // pred_check
    %p1426 = pneg %p26
  $region31: #{lstm_forward.3} parent=0 // pred_check_branch
    %1428 = sbr.rel (%p1426) target = $region33
  $region32: #{lstm_forward.3} parent=0 // pred_region
    %v1429 = vld [vmem:[#allocation2] sm:$0xff]
    %1430 = vst [vmem:[%s7] sm:$0xff] %v1429
    %v1431 = vld [vmem:[#allocation3] sm:$0xff]
    %1432 = vst [vmem:[%s8] sm:$0xff] %v1431
  $region33: #{lstm_forward.3} parent=0 // pred_fallthru
    _
  // Predicated region
  $region34: #{lstm_forward.3} parent=0 // pred_check
    _
  $region35: #{lstm_forward.3} parent=0 // pred_check_branch
    %1434 = sbr.rel (0) target = $region37
  $region36: #{lstm_forward.3} parent=0 // pred_region
    _
  $region37: #{lstm_forward.3} parent=0 // pred_fallthru
    _
  // Predicated region
  $region38: #{lstm_forward.3} parent=0 // pred_check
    _
  $region39: #{lstm_forward.3} parent=0 // pred_check_branch
    %1436 = sbr.rel (0) target = $region41
  $region40: #{lstm_forward.3} parent=0 // pred_region
    _
  $region41: #{lstm_forward.3} parent=0 // pred_fallthru
    _
  // Predicated region
  $region42: #{lstm_forward.3} parent=0 // pred_check
    _
  $region43: #{lstm_forward.3} parent=0 // pred_check_branch
    %1438 = sbr.rel (0) target = $region45
  $region44: #{lstm_forward.3} parent=0 // pred_region
    _
  $region45: #{lstm_forward.3} parent=0 // pred_fallthru
    _
  // Predicated region
  $region46: #{lstm_forward.3} parent=0 // pred_check
    _
  $region47: #{lstm_forward.3} parent=0 // pred_check_branch
    %1440 = sbr.rel (0) target = $region49
  $region48: #{lstm_forward.3} parent=0 // pred_region
    _
  $region49: #{lstm_forward.3} parent=0 // pred_fallthru
    _
  // Predicated region
  $region50: #{lstm_forward.3} parent=0 // pred_check
    _
  $region51: #{lstm_forward.3} parent=0 // pred_check_branch
    %1442 = sbr.rel (0) target = $region53
  $region52: #{lstm_forward.3} parent=0 // pred_region
    _
  $region53: #{lstm_forward.3} parent=0 // pred_fallthru
    _
  // Predicated region
  $region54: #{lstm_forward.3} parent=0 // pred_check
    _
  $region55: #{lstm_forward.3} parent=0 // pred_check_branch
    %1444 = sbr.rel (0) target = $region57
  $region56: #{lstm_forward.3} parent=0 // pred_region
    _
  $region57: #{lstm_forward.3} parent=0 // pred_fallthru
    _

</llo_original>
